<compile_context>
chip_gen: v6e
topology: v6e:2x2x1
jax: 0.10.0
libtpu: 0.0.40
codegen_flags: <defaults>
</compile_context>

<pallas_src>
import jax
import jax.numpy as jnp
from jax.experimental import pallas as pl
from jax.experimental.pallas import tpu as pltpu

_LANE = 128
_TARGET_BLOCK_BYTES = 2 << 20      # ~2 MiB per block -> ~8 MiB double buffered
_MIN_PALLAS_BYTES = 512 << 10      # below this, plain XLA broadcast-add wins


def _add_bias_kernel(x_ref, b_ref, o_ref):
    # Elementwise broadcast add on the VPU.
    o_ref[...] = x_ref[...] + b_ref[...]


def _sublane_multiple(dtype) -> int:
    # f32 -> 8, bf16 -> 16, int8/fp8 -> 32 (sub-32-bit dtypes pack on sublanes).
    return max(8, 32 // jnp.dtype(dtype).itemsize)


def _pick_row_tile(n_rows: int, row_bytes: int, sublane_mult: int) -> int:
    tn = max(1, _TARGET_BLOCK_BYTES // max(row_bytes, 1))
    tn = (tn // sublane_mult) * sublane_mult
    tn = max(sublane_mult, tn)
    return min(tn, n_rows)   # == n_rows (full dim) when the array is small


def _add_bias_2d_pallas(x, b_row, donate: bool):
    N, C = x.shape
    itemsize = jnp.dtype(x.dtype).itemsize
    tn = _pick_row_tile(N, C * itemsize, _sublane_multiple(x.dtype))
    extra = {"input_output_aliases": {0: 0}} if donate else {}
    return pl.pallas_call(
        _add_bias_kernel,
        out_shape=jax.ShapeDtypeStruct((N, C), x.dtype),
        grid=(pl.cdiv(N, tn),),
        in_specs=[
            pl.BlockSpec((tn, C), lambda i: (i, 0)),
            pl.BlockSpec((1, C), lambda i: (0, 0)),
        ],
        out_specs=pl.BlockSpec((tn, C), lambda i: (i, 0)),
        compiler_params=pltpu.CompilerParams(
            dimension_semantics=("parallel",)),
        **extra,
    )(x, b_row)


def _add_bias_4d_pallas(x, b_col, donate: bool):
    N, C, H, W = x.shape
    HW = H * W
    x_flat = x.reshape(N, C, HW)                 # glue: lane-dense spatial axis
    itemsize = jnp.dtype(x.dtype).itemsize
    per_batch_bytes = C * HW * itemsize
    tb = max(1, min(N, _TARGET_BLOCK_BYTES // max(per_batch_bytes, 1)))
    extra = {"input_output_aliases": {0: 0}} if donate else {}
    out_flat = pl.pallas_call(
        _add_bias_kernel,
        out_shape=jax.ShapeDtypeStruct((N, C, HW), x.dtype),
        grid=(pl.cdiv(N, tb),),
        in_specs=[
            pl.BlockSpec((tb, C, HW), lambda i: (i, 0, 0)),
            pl.BlockSpec((1, C, 1), lambda i: (0, 0, 0)),
        ],
        out_specs=pl.BlockSpec((tb, C, HW), lambda i: (i, 0, 0)),
        compiler_params=pltpu.CompilerParams(
            dimension_semantics=("parallel",)),
        **extra,
    )(x_flat, b_col)
    return out_flat.reshape(N, C, H, W)


def add_bias(x, bias_param, *, donate: bool = False):
    """Forward pass of AddBias.

    x:          (N, C) or (N, C, H, W) array
    bias_param: (C, 1) parameter (matches nn.Parameter(bias.unsqueeze(1)))
    donate:     if True, alias the output onto x (caller must donate x).
    """
    C = bias_param.shape[0]
    total_bytes = x.size * jnp.dtype(x.dtype).itemsize

    if x.ndim == 2:
        assert x.shape[1] == C
        b = bias_param.reshape(1, C).astype(x.dtype)
        if total_bytes < _MIN_PALLAS_BYTES or C % _LANE != 0:
            # Tiny, or C not lane-dense (masked vst at <128 lanes): let XLA
            # fuse the broadcast-add.
            # TODO(synk): optional re-layout to put an N-multiple-of-128 on
            # lanes for large arrays with small C.
            return x + b
        return _add_bias_2d_pallas(x, b, donate)

    elif x.ndim == 4:
        N, Cx, H, W = x.shape
        assert Cx == C
        if total_bytes < _MIN_PALLAS_BYTES or (H * W) % _LANE != 0:
            return x + bias_param.reshape(1, C, 1, 1).astype(x.dtype)
        b = bias_param.reshape(1, C, 1).astype(x.dtype)
        return _add_bias_4d_pallas(x, b, donate)

    else:
        raise ValueError(f"AddBias expects 2D or 4D input, got ndim={x.ndim}")


if __name__ == "__main__":
    key = jax.random.PRNGKey(0)
    (k_bias, k_x2, k_x4,
     k_bias_big, k_x2_big, k_x4_big) = jax.random.split(key, 6)

    # --- Module-consistent small shapes (take the XLA fast path) ---
    C = 4
    bias_vec = jax.random.normal(k_bias, (C,), dtype=jnp.float32)
    bias_param = bias_vec[:, None]           # (C, 1) == bias.unsqueeze(1)

    x2 = jax.random.normal(k_x2, (2, C), dtype=jnp.float32)
    out2 = jax.block_until_ready(add_bias(x2, bias_param))
    ref2 = x2 + bias_vec.reshape(1, C)
    assert out2.shape == ref2.shape and out2.dtype == ref2.dtype
    assert jnp.allclose(out2, ref2, atol=1e-6, rtol=1e-6)

    x4 = jax.random.normal(k_x4, (2, C, 16, 16), dtype=jnp.float32)
    out4 = jax.block_until_ready(add_bias(x4, bias_param))
    ref4 = x4 + bias_vec.reshape(1, C, 1, 1)
    assert out4.shape == ref4.shape and out4.dtype == ref4.dtype
    assert jnp.allclose(out4, ref4, atol=1e-6, rtol=1e-6)

    # --- Larger lane-dense shapes that exercise the tiled Pallas path ---
    Cb = 256
    bias_big = jax.random.normal(k_bias_big, (Cb,), dtype=jnp.float32)
    bias_big_param = bias_big[:, None]       # (Cb, 1)

    # 2D: (4096, 256) f32 = 4 MiB -> tn=2048, grid=(2,), lane-dense C.
    x2b = jax.random.normal(k_x2_big, (4096, Cb), dtype=jnp.float32)
    out2b = jax.block_until_ready(add_bias(x2b, bias_big_param))
    ref2b = x2b + bias_big.reshape(1, Cb)
    assert jnp.allclose(out2b, ref2b, atol=1e-6, rtol=1e-6)

    # 4D: (24, 256, 16, 16) f32 = 6 MiB -> tb=8, grid=(3,), HW=256 on lanes.
    x4b = jax.random.normal(k_x4_big, (24, Cb, 16, 16), dtype=jnp.float32)
    out4b = jax.block_until_ready(add_bias(x4b, bias_big_param))
    ref4b = x4b + bias_big.reshape(1, Cb, 1, 1)
    assert jnp.allclose(out4b, ref4b, atol=1e-6, rtol=1e-6)

    print("KERNEL_OK")
</pallas_src>

<mosaic_0001>
module attributes {stable_mosaic.version = 11 : i64} {
  func.func @_add_bias_kernel(%arg0: i32, %arg1: memref<2048x256xf32, #tpu.memory_space<vmem>>, %arg2: memref<1x256xf32, #tpu.memory_space<vmem>>, %arg3: memref<2048x256xf32, #tpu.memory_space<vmem>>) attributes {dimension_semantics = [#tpu.dimension_semantics<parallel>], iteration_bounds = array<i64: 2>, scalar_prefetch = 0 : i64, scratch_operands = 0 : i64, tpu.core_type = #tpu.core_type<tc>, window_params = [{transform_indices = @transform_0, window_bounds = array<i64: 2048, 256>}, {pipeline_mode = #tpu.pipeline_mode<synchronous>, transform_indices = @transform_1, window_bounds = array<i64: 1, 256>}, {transform_indices = @transform_2, window_bounds = array<i64: 2048, 256>}]} {
    %c0 = arith.constant 0 : index
    %c0_0 = arith.constant 0 : index
    %0 = vector.load %arg1[%c0, %c0_0] : memref<2048x256xf32, #tpu.memory_space<vmem>>, vector<2048x256xf32>
    %c0_1 = arith.constant 0 : index
    %c0_2 = arith.constant 0 : index
    %1 = vector.load %arg2[%c0_1, %c0_2] : memref<1x256xf32, #tpu.memory_space<vmem>>, vector<1x256xf32>
    %2 = vector.broadcast %1 : vector<1x256xf32> to vector<2048x256xf32>
    %3 = arith.addf %0, %2 : vector<2048x256xf32>
    %c0_3 = arith.constant 0 : index
    %c0_4 = arith.constant 0 : index
    %4 = vector.load %arg3[%c0_3, %c0_4] : memref<2048x256xf32, #tpu.memory_space<vmem>>, vector<2048x256xf32>
    tpu.vector_store %arg3[%c0_3, %c0_4], %3 {strides = array<i32>} : memref<2048x256xf32, #tpu.memory_space<vmem>>, vector<2048x256xf32>,
    return
  }
  func.func @transform_0(%arg0: i32) -> (i32, i32) {
    %c0_i32 = arith.constant 0 : i32
    %c0_i32_0 = arith.constant 0 : i32
    return %arg0, %c0_i32 : i32, i32
  }
  func.func @transform_1(%arg0: i32) -> (i32, i32) {
    %c0_i32 = arith.constant 0 : i32
    %c0_i32_0 = arith.constant 0 : i32
    %c0_i32_1 = arith.constant 0 : i32
    return %c0_i32, %c0_i32_0 : i32, i32
  }
  func.func @transform_2(%arg0: i32) -> (i32, i32) {
    %c0_i32 = arith.constant 0 : i32
    %c0_i32_0 = arith.constant 0 : i32
    return %arg0, %c0_i32 : i32, i32
  }
}

</mosaic_0001>

<llo_original>
// kernel: tpu_custom_call.1
$region0: #{tpu_custom_call.1}
  #allocation0 [shape = 'u32[]', space=smem, size = 0x4, offset = 0x4, fixed_abs, tag = 'smem constant byte address 0x4 - core index']
  #allocation1 [shape = 'u32[144,128]{1,0:T(1,128)}', space=vmem, size = 0x12000, scoped, tag = 'internal scratch']
  %s0 = inlined_call_operand.hbm [shape: f32[4096,256], index: 0, kind: input, shape index: {}]
  %s1 = inlined_call_operand.hbm [shape: f32[1,256], index: 1, kind: input, shape index: {}]
  %s2 = inlined_call_operand.hbm [shape: f32[4096,256], index: 2, kind: output, shape index: {}]
  %s3 = sld [smem:[#allocation0]]
  $region49: #{tpu_custom_call.1} parent=0
    _
  %s5 = ssub.s32 1, %s3
  %s6 = scalar_select 0, %s5, %s3
  $region1: #{tpu_custom_call.1} parent=0
    #allocation2 [shape = 'u8[4194304]{0}', space=vmem, size = 0x400000, scoped, tag = 'input window, operand 0']
    #allocation3 [shape = 's32[2]{0}', space=sflag, size = 0x8, scoped, tag = 'scoped memory for tpu_custom_call.1']
    #allocation4 [shape = 's32[2]{0}', space=sflag, size = 0x8, scoped, tag = 'scoped memory for tpu_custom_call.1']
    #allocation5 [shape = 'u8[1024]{0}', space=vmem, size = 0x400, scoped, tag = 'input window, operand 1, single buffered']
    #allocation6 [shape = 's32[1]{0}', space=sflag, size = 0x4, scoped, tag = 'scoped memory for tpu_custom_call.1']
    #allocation7 [shape = 'u8[4194304]{0}', space=vmem, size = 0x400000, scoped, tag = 'output window, operand 0']
    %7 = vsyncpa [#allocation3], 0
    %s8 = scalar_lea.sflag [#allocation3], 1
    %9 = vsyncpa %s8, 0
    %10 = vsyncpa [#allocation6], 0
    %11 = vsyncpa [#allocation4], 0
    %s12 = scalar_lea.sflag [#allocation4], 1
    %13 = vsyncpa %s12, 0
    loop: start=0, step=1, limit=4
    $region2: #{tpu_custom_call.1} parent=1 // loop_pre_header
      _
    $region3: #{tpu_custom_call.1} parent=1 // loop_header
      %s15 = sphi 0, %s19
      %p16 = scmp.ge.s32.totalorder %s15, 4
      %s25 = sphi 0, %s27
      %s28 = sphi 0, %s25
      %s29 = sphi 0, %s28
      %s45 = sphi 0, %s29
      %s49 = sphi 0, %s49
      %s51 = sphi 0, %s49
      %s52 = sphi 0, %s51
      %s66 = sphi 0, %s52
      %s72 = sphi 0, %s74
      %s75 = sphi 0, %s72
      %s76 = sphi 0, %s75
      %s92 = sphi 0, %s76
    $region4: #{tpu_custom_call.1} parent=1 // loop_header_branch
      %18 = sbr.rel (%p16) target = $region8
    $region5: #{tpu_custom_call.1} parent=1 // loop_body
      %s20 = ssub.s32 %s15, 1
      %s21 = ssub.s32 %s15, 2
      %s22 = sadd.s32 %s15, 1
      %s23 = ssub.s32 %s15, %s22
      %p24 = scmp.eq.s32.totalorder %s23, 0
      %s26 = sadd.s32 %s25, 1
      %s27 = scalar_select %p24, %s25, %s26
      %p30 = pneg %p24
      %p31 = scmp.eq.s32.totalorder %s15, 1
      %p32 = por %p30, %p31
      %p33 = scmp.ne.s32.totalorder %s25, %s28
      %p34 = scmp.eq.s32.totalorder %s15, 0
      %p35 = por %p33, %p34
      %p36 = scmp.ne.s32.totalorder %s25, %s28
      %p37 = scmp.eq.s32.totalorder %s20, 1
      %p38 = por %p36, %p37
      %p39 = scmp.ne.s32.totalorder %s28, %s29
      %p40 = scmp.eq.s32.totalorder %s20, 0
      %p41 = por %p39, %p40
      %p42 = scmp.ne.s32.totalorder %s28, %s29
      %p43 = scmp.eq.s32.totalorder %s21, 1
      %p44 = por %p42, %p43
      %p46 = scmp.ne.s32.totalorder %s29, %s45
      %p47 = scmp.eq.s32.totalorder %s21, 0
      %p48 = por %p46, %p47
      %s50 = sadd.s32 %s49, 1
      %p53 = scmp.eq.s32.totalorder %s15, 1
      %p54 = scmp.ne.s32.totalorder %s49, %s51
      %p55 = scmp.eq.s32.totalorder %s15, 0
      %p56 = por %p54, %p55
      %p57 = scmp.ne.s32.totalorder %s49, %s51
      %p58 = scmp.eq.s32.totalorder %s20, 1
      %p59 = por %p57, %p58
      %p60 = scmp.ne.s32.totalorder %s51, %s52
      %p61 = scmp.eq.s32.totalorder %s20, 0
      %p62 = por %p60, %p61
      %p63 = scmp.ne.s32.totalorder %s51, %s52
      %p64 = scmp.eq.s32.totalorder %s21, 1
      %p65 = por %p63, %p64
      %p67 = scmp.ne.s32.totalorder %s52, %s66
      %p68 = scmp.eq.s32.totalorder %s21, 0
      %p69 = por %p67, %p68
      %s70 = ssub.s32 %s15, %s22
      %p71 = scmp.eq.s32.totalorder %s70, 0
      %s73 = sadd.s32 %s72, 1
      %s74 = scalar_select %p71, %s72, %s73
      %p77 = pneg %p71
      %p78 = scmp.eq.s32.totalorder %s15, 1
      %p79 = por %p77, %p78
      %p80 = scmp.ne.s32.totalorder %s72, %s75
      %p81 = scmp.eq.s32.totalorder %s15, 0
      %p82 = por %p80, %p81
      %p83 = scmp.ne.s32.totalorder %s72, %s75
      %p84 = scmp.eq.s32.totalorder %s20, 1
      %p85 = por %p83, %p84
      %p86 = scmp.ne.s32.totalorder %s75, %s76
      %p87 = scmp.eq.s32.totalorder %s20, 0
      %p88 = por %p86, %p87
      %p89 = scmp.ne.s32.totalorder %s75, %s76
      %p90 = scmp.eq.s32.totalorder %s21, 1
      %p91 = por %p89, %p90
      %p93 = scmp.ne.s32.totalorder %s76, %s92
      %p94 = scmp.eq.s32.totalorder %s21, 0
      %p95 = por %p93, %p94
      %p96 = scmp.le.s32.totalorder 1, %s15
      %p97 = scmp.lt.s32.totalorder %s15, 3
      %p98 = pnand %p96, %p97
      %p99 = pneg %p98
      // Predicated region
      $region9: #{tpu_custom_call.1} parent=5 // pred_check
        _
      $region10: #{tpu_custom_call.1} parent=5 // pred_check_branch
        %101 = sbr.rel (%p98) target = $region12
      $region11: #{tpu_custom_call.1} parent=5 // pred_region
        %s102 = ssub.s32 %s15, 1
        // Predicated region
        $region13: #{tpu_custom_call.1} parent=11 // pred_check
          %p103 = pneg %p62
        $region14: #{tpu_custom_call.1} parent=11 // pred_check_branch
          %105 = sbr.rel (%p103) target = $region16
        $region15: #{tpu_custom_call.1} parent=11 // pred_region
          %s107 = ssub.s32 32, 32
          %108 = vsyncadd [#allocation6], %s107
          %s110 = sshll.u32 [#allocation5], 4
          %s111 = int_to_ptr.vmem [resolvable:$true] %s110
          %113 = dma.hbm_to_vmem [thread:$0]  %s1, 32, %s111, [#allocation6]
        $region16: #{tpu_custom_call.1} parent=11 // pred_fallthru
          _
      $region12: #{tpu_custom_call.1} parent=5 // pred_fallthru
        _
      %p114 = scmp.lt.s32.totalorder %s15, 2
      // Predicated region
      $region17: #{tpu_custom_call.1} parent=5 // pred_check
        %p115 = pneg %p114
      $region18: #{tpu_custom_call.1} parent=5 // pred_check_branch
        %117 = sbr.rel (%p115) target = $region20
      $region19: #{tpu_custom_call.1} parent=5 // pred_region
        // Predicated region
        $region21: #{tpu_custom_call.1} parent=19 // pred_check
          %p118 = pneg %p35
        $region22: #{tpu_custom_call.1} parent=19 // pred_check_branch
          %120 = sbr.rel (%p118) target = $region24
        $region23: #{tpu_custom_call.1} parent=19 // pred_region
          %s121 = sand.u32 %s25, 1
          %s122 = scalar_lea.sflag [#allocation3], %s121
          %s123 = sand.u32 %s25, 1
          %s124 = smul.addr %s123, 4096
          %s125 = scalar_lea.vmem [#allocation2], %s124
          %s126 = smul.u32 256, %s15
          %s128 = ssub.s32 65536, 65536
          %129 = vsyncadd %s122, %s128
          %s130 = smul.addr %s126, 2
          %s131 = smul.addr %s130, 128
          %s132 = scalar_lea.hbm %s0, %s131
          %s133 = sshll.u32 %s125, 4
          %s134 = int_to_ptr.vmem [resolvable:$true] %s133
          %139 = dma.hbm_to_vmem [thread:$0]  %s132, 65536, %s134, %s122, 256, 256, 16
        $region24: #{tpu_custom_call.1} parent=19 // pred_fallthru
          _
      $region20: #{tpu_custom_call.1} parent=5 // pred_fallthru
        _
      %p140 = scmp.le.s32.totalorder 1, %s15
      %p141 = scmp.lt.s32.totalorder %s15, 3
      %p142 = pnand %p140, %p141
      %p143 = pneg %p142
      // Predicated region
      $region25: #{tpu_custom_call.1} parent=5 // pred_check
        _
      $region26: #{tpu_custom_call.1} parent=5 // pred_check_branch
        %145 = sbr.rel (%p142) target = $region28
      $region27: #{tpu_custom_call.1} parent=5 // pred_region
        %s146 = ssub.s32 %s15, 1
        %s147 = sand.u32 %s28, 1
        %s148 = scalar_lea.sflag [#allocation3], %s147
        %s149 = sand.u32 %s28, 1
        %s150 = smul.addr %s149, 4096
        %s151 = scalar_lea.vmem [#allocation2], %s150
        // Predicated region
        $region29: #{tpu_custom_call.1} parent=27 // pred_check
          %p152 = pneg %p41
        $region30: #{tpu_custom_call.1} parent=27 // pred_check_branch
          %154 = sbr.rel (%p152) target = $region32
        $region31: #{tpu_custom_call.1} parent=27 // pred_region
          %155 = dma.done %s148, 65536
        $region32: #{tpu_custom_call.1} parent=27 // pred_fallthru
          _
        // Predicated region
        $region33: #{tpu_custom_call.1} parent=27 // pred_check
          %p156 = pneg %p62
        $region34: #{tpu_custom_call.1} parent=27 // pred_check_branch
          %158 = sbr.rel (%p156) target = $region36
        $region35: #{tpu_custom_call.1} parent=27 // pred_region
          %159 = dma.done [#allocation6], 32
        $region36: #{tpu_custom_call.1} parent=27 // pred_fallthru
          _
        %s160 = sand.u32 %s28, 1
        %s161 = scalar_lea.sflag [#allocation3], %s160
        %s162 = sand.u32 %s28, 1
        %s163 = smul.addr %s162, 4096
        %s164 = scalar_lea.vmem [#allocation2], %s163
        %p165 = pneg %p41
        %p166 = pneg %p38
        %p167 = pneg %p62
        %p168 = pneg %p59
        %p169 = pneg %p88
        %p170 = pneg %p85
        %s171 = sand.u32 %s75, 1
        %s172 = scalar_lea.sflag [#allocation4], %s171
        %s173 = sand.u32 %s75, 1
        %s174 = smul.addr %s173, 4096
        %s175 = scalar_lea.vmem [#allocation7], %s174
        %s176 = smul.u32 256, %s20
        %s177 = smul.u32 256, %s20
        %v178 = vld [vmem:[%s151] sm:$0xff]
        %v179 = vld [vmem:[%s151 + $0x8] sm:$0xff]
        %v180 = vld [vmem:[%s151 + $0x10] sm:$0xff]
        %v181 = vld [vmem:[%s151 + $0x18] sm:$0xff]
        %v182 = vld [vmem:[%s151 + $0x20] sm:$0xff]
        %v183 = vld [vmem:[%s151 + $0x28] sm:$0xff]
        %v184 = vld [vmem:[%s151 + $0x30] sm:$0xff]
        %v185 = vld [vmem:[%s151 + $0x38] sm:$0xff]
        %v186 = vld [vmem:[%s151 + $0x40] sm:$0xff]
        %v187 = vld [vmem:[%s151 + $0x48] sm:$0xff]
        %v188 = vld [vmem:[%s151 + $0x50] sm:$0xff]
        %v189 = vld [vmem:[%s151 + $0x58] sm:$0xff]
        %v190 = vld [vmem:[%s151 + $0x60] sm:$0xff]
        %v191 = vld [vmem:[%s151 + $0x68] sm:$0xff]
        %v192 = vld [vmem:[%s151 + $0x70] sm:$0xff]
        %v193 = vld [vmem:[%s151 + $0x78] sm:$0xff]
        %v194 = vld [vmem:[%s151 + $0x80] sm:$0xff]
        %v195 = vld [vmem:[%s151 + $0x88] sm:$0xff]
        %v196 = vld [vmem:[%s151 + $0x90] sm:$0xff]
        %v197 = vld [vmem:[%s151 + $0x98] sm:$0xff]
        %v198 = vld [vmem:[%s151 + $0xa0] sm:$0xff]
        %v199 = vld [vmem:[%s151 + $0xa8] sm:$0xff]
        %v200 = vld [vmem:[%s151 + $0xb0] sm:$0xff]
        %v201 = vld [vmem:[%s151 + $0xb8] sm:$0xff]
        %v202 = vld [vmem:[%s151 + $0xc0] sm:$0xff]
        %v203 = vld [vmem:[%s151 + $0xc8] sm:$0xff]
        %v204 = vld [vmem:[%s151 + $0xd0] sm:$0xff]
        %v205 = vld [vmem:[%s151 + $0xd8] sm:$0xff]
        %v206 = vld [vmem:[%s151 + $0xe0] sm:$0xff]
        %v207 = vld [vmem:[%s151 + $0xe8] sm:$0xff]
        %v208 = vld [vmem:[%s151 + $0xf0] sm:$0xff]
        %v209 = vld [vmem:[%s151 + $0xf8] sm:$0xff]
        %v210 = vld [vmem:[%s151 + $0x100] sm:$0xff]
        %v211 = vld [vmem:[%s151 + $0x108] sm:$0xff]
        %v212 = vld [vmem:[%s151 + $0x110] sm:$0xff]
        %v213 = vld [vmem:[%s151 + $0x118] sm:$0xff]
        %v214 = vld [vmem:[%s151 + $0x120] sm:$0xff]
        %v215 = vld [vmem:[%s151 + $0x128] sm:$0xff]
        %v216 = vld [vmem:[%s151 + $0x130] sm:$0xff]
        %v217 = vld [vmem:[%s151 + $0x138] sm:$0xff]
        %v218 = vld [vmem:[%s151 + $0x140] sm:$0xff]
        %v219 = vld [vmem:[%s151 + $0x148] sm:$0xff]
        %v220 = vld [vmem:[%s151 + $0x150] sm:$0xff]
        %v221 = vld [vmem:[%s151 + $0x158] sm:$0xff]
        %v222 = vld [vmem:[%s151 + $0x160] sm:$0xff]
        %v223 = vld [vmem:[%s151 + $0x168] sm:$0xff]
        %v224 = vld [vmem:[%s151 + $0x170] sm:$0xff]
        %v225 = vld [vmem:[%s151 + $0x178] sm:$0xff]
        %v226 = vld [vmem:[%s151 + $0x180] sm:$0xff]
        %v227 = vld [vmem:[%s151 + $0x188] sm:$0xff]
        %v228 = vld [vmem:[%s151 + $0x190] sm:$0xff]
        %v229 = vld [vmem:[%s151 + $0x198] sm:$0xff]
        %v230 = vld [vmem:[%s151 + $0x1a0] sm:$0xff]
        %v231 = vld [vmem:[%s151 + $0x1a8] sm:$0xff]
        %v232 = vld [vmem:[%s151 + $0x1b0] sm:$0xff]
        %v233 = vld [vmem:[%s151 + $0x1b8] sm:$0xff]
        %v234 = vld [vmem:[%s151 + $0x1c0] sm:$0xff]
        %v235 = vld [vmem:[%s151 + $0x1c8] sm:$0xff]
        %v236 = vld [vmem:[%s151 + $0x1d0] sm:$0xff]
        %v237 = vld [vmem:[%s151 + $0x1d8] sm:$0xff]
        %v238 = vld [vmem:[%s151 + $0x1e0] sm:$0xff]
        %v239 = vld [vmem:[%s151 + $0x1e8] sm:$0xff]
        %v240 = vld [vmem:[%s151 + $0x1f0] sm:$0xff]
        %v241 = vld [vmem:[%s151 + $0x1f8] sm:$0xff]
        %v242 = vld [vmem:[%s151 + $0x200] sm:$0xff]
        %v243 = vld [vmem:[%s151 + $0x208] sm:$0xff]
        %v244 = vld [vmem:[%s151 + $0x210] sm:$0xff]
        %v245 = vld [vmem:[%s151 + $0x218] sm:$0xff]
        %v246 = vld [vmem:[%s151 + $0x220] sm:$0xff]
        %v247 = vld [vmem:[%s151 + $0x228] sm:$0xff]
        %v248 = vld [vmem:[%s151 + $0x230] sm:$0xff]
        %v249 = vld [vmem:[%s151 + $0x238] sm:$0xff]
        %v250 = vld [vmem:[%s151 + $0x240] sm:$0xff]
        %v251 = vld [vmem:[%s151 + $0x248] sm:$0xff]
        %v252 = vld [vmem:[%s151 + $0x250] sm:$0xff]
        %v253 = vld [vmem:[%s151 + $0x258] sm:$0xff]
        %v254 = vld [vmem:[%s151 + $0x260] sm:$0xff]
        %v255 = vld [vmem:[%s151 + $0x268] sm:$0xff]
        %v256 = vld [vmem:[%s151 + $0x270] sm:$0xff]
        %v257 = vld [vmem:[%s151 + $0x278] sm:$0xff]
        %v258 = vld [vmem:[%s151 + $0x280] sm:$0xff]
        %v259 = vld [vmem:[%s151 + $0x288] sm:$0xff]
        %v260 = vld [vmem:[%s151 + $0x290] sm:$0xff]
        %v261 = vld [vmem:[%s151 + $0x298] sm:$0xff]
        %v262 = vld [vmem:[%s151 + $0x2a0] sm:$0xff]
        %v263 = vld [vmem:[%s151 + $0x2a8] sm:$0xff]
        %v264 = vld [vmem:[%s151 + $0x2b0] sm:$0xff]
        %v265 = vld [vmem:[%s151 + $0x2b8] sm:$0xff]
        %v266 = vld [vmem:[%s151 + $0x2c0] sm:$0xff]
        %v267 = vld [vmem:[%s151 + $0x2c8] sm:$0xff]
        %v268 = vld [vmem:[%s151 + $0x2d0] sm:$0xff]
        %v269 = vld [vmem:[%s151 + $0x2d8] sm:$0xff]
        %v270 = vld [vmem:[%s151 + $0x2e0] sm:$0xff]
        %v271 = vld [vmem:[%s151 + $0x2e8] sm:$0xff]
        %v272 = vld [vmem:[%s151 + $0x2f0] sm:$0xff]
        %v273 = vld [vmem:[%s151 + $0x2f8] sm:$0xff]
        %v274 = vld [vmem:[%s151 + $0x300] sm:$0xff]
        %v275 = vld [vmem:[%s151 + $0x308] sm:$0xff]
        %v276 = vld [vmem:[%s151 + $0x310] sm:$0xff]
        %v277 = vld [vmem:[%s151 + $0x318] sm:$0xff]
        %v278 = vld [vmem:[%s151 + $0x320] sm:$0xff]
        %v279 = vld [vmem:[%s151 + $0x328] sm:$0xff]
        %v280 = vld [vmem:[%s151 + $0x330] sm:$0xff]
        %v281 = vld [vmem:[%s151 + $0x338] sm:$0xff]
        %v282 = vld [vmem:[%s151 + $0x340] sm:$0xff]
        %v283 = vld [vmem:[%s151 + $0x348] sm:$0xff]
        %v284 = vld [vmem:[%s151 + $0x350] sm:$0xff]
        %v285 = vld [vmem:[%s151 + $0x358] sm:$0xff]
        %v286 = vld [vmem:[%s151 + $0x360] sm:$0xff]
        %v287 = vld [vmem:[%s151 + $0x368] sm:$0xff]
        %v288 = vld [vmem:[%s151 + $0x370] sm:$0xff]
        %v289 = vld [vmem:[%s151 + $0x378] sm:$0xff]
        %v290 = vld [vmem:[%s151 + $0x380] sm:$0xff]
        %v291 = vld [vmem:[%s151 + $0x388] sm:$0xff]
        %v292 = vld [vmem:[%s151 + $0x390] sm:$0xff]
        %v293 = vld [vmem:[%s151 + $0x398] sm:$0xff]
        %v294 = vld [vmem:[%s151 + $0x3a0] sm:$0xff]
        %v295 = vld [vmem:[%s151 + $0x3a8] sm:$0xff]
        %v296 = vld [vmem:[%s151 + $0x3b0] sm:$0xff]
        %v297 = vld [vmem:[%s151 + $0x3b8] sm:$0xff]
        %v298 = vld [vmem:[%s151 + $0x3c0] sm:$0xff]
        %v299 = vld [vmem:[%s151 + $0x3c8] sm:$0xff]
        %v300 = vld [vmem:[%s151 + $0x3d0] sm:$0xff]
        %v301 = vld [vmem:[%s151 + $0x3d8] sm:$0xff]
        %v302 = vld [vmem:[%s151 + $0x3e0] sm:$0xff]
        %v303 = vld [vmem:[%s151 + $0x3e8] sm:$0xff]
        %v304 = vld [vmem:[%s151 + $0x3f0] sm:$0xff]
        %v305 = vld [vmem:[%s151 + $0x3f8] sm:$0xff]
        %v306 = vld [vmem:[%s151 + $0x400] sm:$0xff]
        %v307 = vld [vmem:[%s151 + $0x408] sm:$0xff]
        %v308 = vld [vmem:[%s151 + $0x410] sm:$0xff]
        %v309 = vld [vmem:[%s151 + $0x418] sm:$0xff]
        %v310 = vld [vmem:[%s151 + $0x420] sm:$0xff]
        %v311 = vld [vmem:[%s151 + $0x428] sm:$0xff]
        %v312 = vld [vmem:[%s151 + $0x430] sm:$0xff]
        %v313 = vld [vmem:[%s151 + $0x438] sm:$0xff]
        %v314 = vld [vmem:[%s151 + $0x440] sm:$0xff]
        %v315 = vld [vmem:[%s151 + $0x448] sm:$0xff]
        %v316 = vld [vmem:[%s151 + $0x450] sm:$0xff]
        %v317 = vld [vmem:[%s151 + $0x458] sm:$0xff]
        %v318 = vld [vmem:[%s151 + $0x460] sm:$0xff]
        %v319 = vld [vmem:[%s151 + $0x468] sm:$0xff]
        %v320 = vld [vmem:[%s151 + $0x470] sm:$0xff]
        %v321 = vld [vmem:[%s151 + $0x478] sm:$0xff]
        %v322 = vld [vmem:[%s151 + $0x480] sm:$0xff]
        %v323 = vld [vmem:[%s151 + $0x488] sm:$0xff]
        %v324 = vld [vmem:[%s151 + $0x490] sm:$0xff]
        %v325 = vld [vmem:[%s151 + $0x498] sm:$0xff]
        %v326 = vld [vmem:[%s151 + $0x4a0] sm:$0xff]
        %v327 = vld [vmem:[%s151 + $0x4a8] sm:$0xff]
        %v328 = vld [vmem:[%s151 + $0x4b0] sm:$0xff]
        %v329 = vld [vmem:[%s151 + $0x4b8] sm:$0xff]
        %v330 = vld [vmem:[%s151 + $0x4c0] sm:$0xff]
        %v331 = vld [vmem:[%s151 + $0x4c8] sm:$0xff]
        %v332 = vld [vmem:[%s151 + $0x4d0] sm:$0xff]
        %v333 = vld [vmem:[%s151 + $0x4d8] sm:$0xff]
        %v334 = vld [vmem:[%s151 + $0x4e0] sm:$0xff]
        %v335 = vld [vmem:[%s151 + $0x4e8] sm:$0xff]
        %v336 = vld [vmem:[%s151 + $0x4f0] sm:$0xff]
        %v337 = vld [vmem:[%s151 + $0x4f8] sm:$0xff]
        %v338 = vld [vmem:[%s151 + $0x500] sm:$0xff]
        %v339 = vld [vmem:[%s151 + $0x508] sm:$0xff]
        %v340 = vld [vmem:[%s151 + $0x510] sm:$0xff]
        %v341 = vld [vmem:[%s151 + $0x518] sm:$0xff]
        %v342 = vld [vmem:[%s151 + $0x520] sm:$0xff]
        %v343 = vld [vmem:[%s151 + $0x528] sm:$0xff]
        %v344 = vld [vmem:[%s151 + $0x530] sm:$0xff]
        %v345 = vld [vmem:[%s151 + $0x538] sm:$0xff]
        %v346 = vld [vmem:[%s151 + $0x540] sm:$0xff]
        %v347 = vld [vmem:[%s151 + $0x548] sm:$0xff]
        %v348 = vld [vmem:[%s151 + $0x550] sm:$0xff]
        %v349 = vld [vmem:[%s151 + $0x558] sm:$0xff]
        %v350 = vld [vmem:[%s151 + $0x560] sm:$0xff]
        %v351 = vld [vmem:[%s151 + $0x568] sm:$0xff]
        %v352 = vld [vmem:[%s151 + $0x570] sm:$0xff]
        %v353 = vld [vmem:[%s151 + $0x578] sm:$0xff]
        %v354 = vld [vmem:[%s151 + $0x580] sm:$0xff]
        %v355 = vld [vmem:[%s151 + $0x588] sm:$0xff]
        %v356 = vld [vmem:[%s151 + $0x590] sm:$0xff]
        %v357 = vld [vmem:[%s151 + $0x598] sm:$0xff]
        %v358 = vld [vmem:[%s151 + $0x5a0] sm:$0xff]
        %v359 = vld [vmem:[%s151 + $0x5a8] sm:$0xff]
        %v360 = vld [vmem:[%s151 + $0x5b0] sm:$0xff]
        %v361 = vld [vmem:[%s151 + $0x5b8] sm:$0xff]
        %v362 = vld [vmem:[%s151 + $0x5c0] sm:$0xff]
        %v363 = vld [vmem:[%s151 + $0x5c8] sm:$0xff]
        %v364 = vld [vmem:[%s151 + $0x5d0] sm:$0xff]
        %v365 = vld [vmem:[%s151 + $0x5d8] sm:$0xff]
        %v366 = vld [vmem:[%s151 + $0x5e0] sm:$0xff]
        %v367 = vld [vmem:[%s151 + $0x5e8] sm:$0xff]
        %v368 = vld [vmem:[%s151 + $0x5f0] sm:$0xff]
        %v369 = vld [vmem:[%s151 + $0x5f8] sm:$0xff]
        %v370 = vld [vmem:[%s151 + $0x600] sm:$0xff]
        %v371 = vld [vmem:[%s151 + $0x608] sm:$0xff]
        %v372 = vld [vmem:[%s151 + $0x610] sm:$0xff]
        %v373 = vld [vmem:[%s151 + $0x618] sm:$0xff]
        %v374 = vld [vmem:[%s151 + $0x620] sm:$0xff]
        %v375 = vld [vmem:[%s151 + $0x628] sm:$0xff]
        %v376 = vld [vmem:[%s151 + $0x630] sm:$0xff]
        %v377 = vld [vmem:[%s151 + $0x638] sm:$0xff]
        %v378 = vld [vmem:[%s151 + $0x640] sm:$0xff]
        %v379 = vld [vmem:[%s151 + $0x648] sm:$0xff]
        %v380 = vld [vmem:[%s151 + $0x650] sm:$0xff]
        %v381 = vld [vmem:[%s151 + $0x658] sm:$0xff]
        %v382 = vld [vmem:[%s151 + $0x660] sm:$0xff]
        %v383 = vld [vmem:[%s151 + $0x668] sm:$0xff]
        %v384 = vld [vmem:[%s151 + $0x670] sm:$0xff]
        %v385 = vld [vmem:[%s151 + $0x678] sm:$0xff]
        %v386 = vld [vmem:[%s151 + $0x680] sm:$0xff]
        %v387 = vld [vmem:[%s151 + $0x688] sm:$0xff]
        %v388 = vld [vmem:[%s151 + $0x690] sm:$0xff]
        %v389 = vld [vmem:[%s151 + $0x698] sm:$0xff]
        %v390 = vld [vmem:[%s151 + $0x6a0] sm:$0xff]
        %v391 = vld [vmem:[%s151 + $0x6a8] sm:$0xff]
        %v392 = vld [vmem:[%s151 + $0x6b0] sm:$0xff]
        %v393 = vld [vmem:[%s151 + $0x6b8] sm:$0xff]
        %v394 = vld [vmem:[%s151 + $0x6c0] sm:$0xff]
        %v395 = vld [vmem:[%s151 + $0x6c8] sm:$0xff]
        %v396 = vld [vmem:[%s151 + $0x6d0] sm:$0xff]
        %v397 = vld [vmem:[%s151 + $0x6d8] sm:$0xff]
        %v398 = vld [vmem:[%s151 + $0x6e0] sm:$0xff]
        %v399 = vld [vmem:[%s151 + $0x6e8] sm:$0xff]
        %v400 = vld [vmem:[%s151 + $0x6f0] sm:$0xff]
        %v401 = vld [vmem:[%s151 + $0x6f8] sm:$0xff]
        %v402 = vld [vmem:[%s151 + $0x700] sm:$0xff]
        %v403 = vld [vmem:[%s151 + $0x708] sm:$0xff]
        %v404 = vld [vmem:[%s151 + $0x710] sm:$0xff]
        %v405 = vld [vmem:[%s151 + $0x718] sm:$0xff]
        %v406 = vld [vmem:[%s151 + $0x720] sm:$0xff]
        %v407 = vld [vmem:[%s151 + $0x728] sm:$0xff]
        %v408 = vld [vmem:[%s151 + $0x730] sm:$0xff]
        %v409 = vld [vmem:[%s151 + $0x738] sm:$0xff]
        %v410 = vld [vmem:[%s151 + $0x740] sm:$0xff]
        %v411 = vld [vmem:[%s151 + $0x748] sm:$0xff]
        %v412 = vld [vmem:[%s151 + $0x750] sm:$0xff]
        %v413 = vld [vmem:[%s151 + $0x758] sm:$0xff]
        %v414 = vld [vmem:[%s151 + $0x760] sm:$0xff]
        %v415 = vld [vmem:[%s151 + $0x768] sm:$0xff]
        %v416 = vld [vmem:[%s151 + $0x770] sm:$0xff]
        %v417 = vld [vmem:[%s151 + $0x778] sm:$0xff]
        %v418 = vld [vmem:[%s151 + $0x780] sm:$0xff]
        %v419 = vld [vmem:[%s151 + $0x788] sm:$0xff]
        %v420 = vld [vmem:[%s151 + $0x790] sm:$0xff]
        %v421 = vld [vmem:[%s151 + $0x798] sm:$0xff]
        %v422 = vld [vmem:[%s151 + $0x7a0] sm:$0xff]
        %v423 = vld [vmem:[%s151 + $0x7a8] sm:$0xff]
        %v424 = vld [vmem:[%s151 + $0x7b0] sm:$0xff]
        %v425 = vld [vmem:[%s151 + $0x7b8] sm:$0xff]
        %v426 = vld [vmem:[%s151 + $0x7c0] sm:$0xff]
        %v427 = vld [vmem:[%s151 + $0x7c8] sm:$0xff]
        %v428 = vld [vmem:[%s151 + $0x7d0] sm:$0xff]
        %v429 = vld [vmem:[%s151 + $0x7d8] sm:$0xff]
        %v430 = vld [vmem:[%s151 + $0x7e0] sm:$0xff]
        %v431 = vld [vmem:[%s151 + $0x7e8] sm:$0xff]
        %v432 = vld [vmem:[%s151 + $0x7f0] sm:$0xff]
        %v433 = vld [vmem:[%s151 + $0x7f8] sm:$0xff]
        %v434 = vld [vmem:[%s151 + $0x800] sm:$0xff]
        %v435 = vld [vmem:[%s151 + $0x808] sm:$0xff]
        %v436 = vld [vmem:[%s151 + $0x810] sm:$0xff]
        %v437 = vld [vmem:[%s151 + $0x818] sm:$0xff]
        %v438 = vld [vmem:[%s151 + $0x820] sm:$0xff]
        %v439 = vld [vmem:[%s151 + $0x828] sm:$0xff]
        %v440 = vld [vmem:[%s151 + $0x830] sm:$0xff]
        %v441 = vld [vmem:[%s151 + $0x838] sm:$0xff]
        %v442 = vld [vmem:[%s151 + $0x840] sm:$0xff]
        %v443 = vld [vmem:[%s151 + $0x848] sm:$0xff]
        %v444 = vld [vmem:[%s151 + $0x850] sm:$0xff]
        %v445 = vld [vmem:[%s151 + $0x858] sm:$0xff]
        %v446 = vld [vmem:[%s151 + $0x860] sm:$0xff]
        %v447 = vld [vmem:[%s151 + $0x868] sm:$0xff]
        %v448 = vld [vmem:[%s151 + $0x870] sm:$0xff]
        %v449 = vld [vmem:[%s151 + $0x878] sm:$0xff]
        %v450 = vld [vmem:[%s151 + $0x880] sm:$0xff]
        %v451 = vld [vmem:[%s151 + $0x888] sm:$0xff]
        %v452 = vld [vmem:[%s151 + $0x890] sm:$0xff]
        %v453 = vld [vmem:[%s151 + $0x898] sm:$0xff]
        %v454 = vld [vmem:[%s151 + $0x8a0] sm:$0xff]
        %v455 = vld [vmem:[%s151 + $0x8a8] sm:$0xff]
        %v456 = vld [vmem:[%s151 + $0x8b0] sm:$0xff]
        %v457 = vld [vmem:[%s151 + $0x8b8] sm:$0xff]
        %v458 = vld [vmem:[%s151 + $0x8c0] sm:$0xff]
        %v459 = vld [vmem:[%s151 + $0x8c8] sm:$0xff]
        %v460 = vld [vmem:[%s151 + $0x8d0] sm:$0xff]
        %v461 = vld [vmem:[%s151 + $0x8d8] sm:$0xff]
        %v462 = vld [vmem:[%s151 + $0x8e0] sm:$0xff]
        %v463 = vld [vmem:[%s151 + $0x8e8] sm:$0xff]
        %v464 = vld [vmem:[%s151 + $0x8f0] sm:$0xff]
        %v465 = vld [vmem:[%s151 + $0x8f8] sm:$0xff]
        %v466 = vld [vmem:[%s151 + $0x900] sm:$0xff]
        %v467 = vld [vmem:[%s151 + $0x908] sm:$0xff]
        %v468 = vld [vmem:[%s151 + $0x910] sm:$0xff]
        %v469 = vld [vmem:[%s151 + $0x918] sm:$0xff]
        %v470 = vld [vmem:[%s151 + $0x920] sm:$0xff]
        %v471 = vld [vmem:[%s151 + $0x928] sm:$0xff]
        %v472 = vld [vmem:[%s151 + $0x930] sm:$0xff]
        %v473 = vld [vmem:[%s151 + $0x938] sm:$0xff]
        %v474 = vld [vmem:[%s151 + $0x940] sm:$0xff]
        %v475 = vld [vmem:[%s151 + $0x948] sm:$0xff]
        %v476 = vld [vmem:[%s151 + $0x950] sm:$0xff]
        %v477 = vld [vmem:[%s151 + $0x958] sm:$0xff]
        %v478 = vld [vmem:[%s151 + $0x960] sm:$0xff]
        %v479 = vld [vmem:[%s151 + $0x968] sm:$0xff]
        %v480 = vld [vmem:[%s151 + $0x970] sm:$0xff]
        %v481 = vld [vmem:[%s151 + $0x978] sm:$0xff]
        %v482 = vld [vmem:[%s151 + $0x980] sm:$0xff]
        %v483 = vld [vmem:[%s151 + $0x988] sm:$0xff]
        %v484 = vld [vmem:[%s151 + $0x990] sm:$0xff]
        %v485 = vld [vmem:[%s151 + $0x998] sm:$0xff]
        %v486 = vld [vmem:[%s151 + $0x9a0] sm:$0xff]
        %v487 = vld [vmem:[%s151 + $0x9a8] sm:$0xff]
        %v488 = vld [vmem:[%s151 + $0x9b0] sm:$0xff]
        %v489 = vld [vmem:[%s151 + $0x9b8] sm:$0xff]
        %v490 = vld [vmem:[%s151 + $0x9c0] sm:$0xff]
        %v491 = vld [vmem:[%s151 + $0x9c8] sm:$0xff]
        %v492 = vld [vmem:[%s151 + $0x9d0] sm:$0xff]
        %v493 = vld [vmem:[%s151 + $0x9d8] sm:$0xff]
        %v494 = vld [vmem:[%s151 + $0x9e0] sm:$0xff]
        %v495 = vld [vmem:[%s151 + $0x9e8] sm:$0xff]
        %v496 = vld [vmem:[%s151 + $0x9f0] sm:$0xff]
        %v497 = vld [vmem:[%s151 + $0x9f8] sm:$0xff]
        %v498 = vld [vmem:[%s151 + $0xa00] sm:$0xff]
        %v499 = vld [vmem:[%s151 + $0xa08] sm:$0xff]
        %v500 = vld [vmem:[%s151 + $0xa10] sm:$0xff]
        %v501 = vld [vmem:[%s151 + $0xa18] sm:$0xff]
        %v502 = vld [vmem:[%s151 + $0xa20] sm:$0xff]
        %v503 = vld [vmem:[%s151 + $0xa28] sm:$0xff]
        %v504 = vld [vmem:[%s151 + $0xa30] sm:$0xff]
        %v505 = vld [vmem:[%s151 + $0xa38] sm:$0xff]
        %v506 = vld [vmem:[%s151 + $0xa40] sm:$0xff]
        %v507 = vld [vmem:[%s151 + $0xa48] sm:$0xff]
        %v508 = vld [vmem:[%s151 + $0xa50] sm:$0xff]
        %v509 = vld [vmem:[%s151 + $0xa58] sm:$0xff]
        %v510 = vld [vmem:[%s151 + $0xa60] sm:$0xff]
        %v511 = vld [vmem:[%s151 + $0xa68] sm:$0xff]
        %v512 = vld [vmem:[%s151 + $0xa70] sm:$0xff]
        %v513 = vld [vmem:[%s151 + $0xa78] sm:$0xff]
        %v514 = vld [vmem:[%s151 + $0xa80] sm:$0xff]
        %v515 = vld [vmem:[%s151 + $0xa88] sm:$0xff]
        %v516 = vld [vmem:[%s151 + $0xa90] sm:$0xff]
        %v517 = vld [vmem:[%s151 + $0xa98] sm:$0xff]
        %v518 = vld [vmem:[%s151 + $0xaa0] sm:$0xff]
        %v519 = vld [vmem:[%s151 + $0xaa8] sm:$0xff]
        %v520 = vld [vmem:[%s151 + $0xab0] sm:$0xff]
        %v521 = vld [vmem:[%s151 + $0xab8] sm:$0xff]
        %v522 = vld [vmem:[%s151 + $0xac0] sm:$0xff]
        %v523 = vld [vmem:[%s151 + $0xac8] sm:$0xff]
        %v524 = vld [vmem:[%s151 + $0xad0] sm:$0xff]
        %v525 = vld [vmem:[%s151 + $0xad8] sm:$0xff]
        %v526 = vld [vmem:[%s151 + $0xae0] sm:$0xff]
        %v527 = vld [vmem:[%s151 + $0xae8] sm:$0xff]
        %v528 = vld [vmem:[%s151 + $0xaf0] sm:$0xff]
        %v529 = vld [vmem:[%s151 + $0xaf8] sm:$0xff]
        %v530 = vld [vmem:[%s151 + $0xb00] sm:$0xff]
        %v531 = vld [vmem:[%s151 + $0xb08] sm:$0xff]
        %v532 = vld [vmem:[%s151 + $0xb10] sm:$0xff]
        %v533 = vld [vmem:[%s151 + $0xb18] sm:$0xff]
        %v534 = vld [vmem:[%s151 + $0xb20] sm:$0xff]
        %v535 = vld [vmem:[%s151 + $0xb28] sm:$0xff]
        %v536 = vld [vmem:[%s151 + $0xb30] sm:$0xff]
        %v537 = vld [vmem:[%s151 + $0xb38] sm:$0xff]
        %v538 = vld [vmem:[%s151 + $0xb40] sm:$0xff]
        %v539 = vld [vmem:[%s151 + $0xb48] sm:$0xff]
        %v540 = vld [vmem:[%s151 + $0xb50] sm:$0xff]
        %v541 = vld [vmem:[%s151 + $0xb58] sm:$0xff]
        %v542 = vld [vmem:[%s151 + $0xb60] sm:$0xff]
        %v543 = vld [vmem:[%s151 + $0xb68] sm:$0xff]
        %v544 = vld [vmem:[%s151 + $0xb70] sm:$0xff]
        %v545 = vld [vmem:[%s151 + $0xb78] sm:$0xff]
        %v546 = vld [vmem:[%s151 + $0xb80] sm:$0xff]
        %v547 = vld [vmem:[%s151 + $0xb88] sm:$0xff]
        %v548 = vld [vmem:[%s151 + $0xb90] sm:$0xff]
        %v549 = vld [vmem:[%s151 + $0xb98] sm:$0xff]
        %v550 = vld [vmem:[%s151 + $0xba0] sm:$0xff]
        %v551 = vld [vmem:[%s151 + $0xba8] sm:$0xff]
        %v552 = vld [vmem:[%s151 + $0xbb0] sm:$0xff]
        %v553 = vld [vmem:[%s151 + $0xbb8] sm:$0xff]
        %v554 = vld [vmem:[%s151 + $0xbc0] sm:$0xff]
        %v555 = vld [vmem:[%s151 + $0xbc8] sm:$0xff]
        %v556 = vld [vmem:[%s151 + $0xbd0] sm:$0xff]
        %v557 = vld [vmem:[%s151 + $0xbd8] sm:$0xff]
        %v558 = vld [vmem:[%s151 + $0xbe0] sm:$0xff]
        %v559 = vld [vmem:[%s151 + $0xbe8] sm:$0xff]
        %v560 = vld [vmem:[%s151 + $0xbf0] sm:$0xff]
        %v561 = vld [vmem:[%s151 + $0xbf8] sm:$0xff]
        %v562 = vld [vmem:[%s151 + $0xc00] sm:$0xff]
        %v563 = vld [vmem:[%s151 + $0xc08] sm:$0xff]
        %v564 = vld [vmem:[%s151 + $0xc10] sm:$0xff]
        %v565 = vld [vmem:[%s151 + $0xc18] sm:$0xff]
        %v566 = vld [vmem:[%s151 + $0xc20] sm:$0xff]
        %v567 = vld [vmem:[%s151 + $0xc28] sm:$0xff]
        %v568 = vld [vmem:[%s151 + $0xc30] sm:$0xff]
        %v569 = vld [vmem:[%s151 + $0xc38] sm:$0xff]
        %v570 = vld [vmem:[%s151 + $0xc40] sm:$0xff]
        %v571 = vld [vmem:[%s151 + $0xc48] sm:$0xff]
        %v572 = vld [vmem:[%s151 + $0xc50] sm:$0xff]
        %v573 = vld [vmem:[%s151 + $0xc58] sm:$0xff]
        %v574 = vld [vmem:[%s151 + $0xc60] sm:$0xff]
        %v575 = vld [vmem:[%s151 + $0xc68] sm:$0xff]
        %v576 = vld [vmem:[%s151 + $0xc70] sm:$0xff]
        %v577 = vld [vmem:[%s151 + $0xc78] sm:$0xff]
        %v578 = vld [vmem:[%s151 + $0xc80] sm:$0xff]
        %v579 = vld [vmem:[%s151 + $0xc88] sm:$0xff]
        %v580 = vld [vmem:[%s151 + $0xc90] sm:$0xff]
        %v581 = vld [vmem:[%s151 + $0xc98] sm:$0xff]
        %v582 = vld [vmem:[%s151 + $0xca0] sm:$0xff]
        %v583 = vld [vmem:[%s151 + $0xca8] sm:$0xff]
        %v584 = vld [vmem:[%s151 + $0xcb0] sm:$0xff]
        %v585 = vld [vmem:[%s151 + $0xcb8] sm:$0xff]
        %v586 = vld [vmem:[%s151 + $0xcc0] sm:$0xff]
        %v587 = vld [vmem:[%s151 + $0xcc8] sm:$0xff]
        %v588 = vld [vmem:[%s151 + $0xcd0] sm:$0xff]
        %v589 = vld [vmem:[%s151 + $0xcd8] sm:$0xff]
        %v590 = vld [vmem:[%s151 + $0xce0] sm:$0xff]
        %v591 = vld [vmem:[%s151 + $0xce8] sm:$0xff]
        %v592 = vld [vmem:[%s151 + $0xcf0] sm:$0xff]
        %v593 = vld [vmem:[%s151 + $0xcf8] sm:$0xff]
        %v594 = vld [vmem:[%s151 + $0xd00] sm:$0xff]
        %v595 = vld [vmem:[%s151 + $0xd08] sm:$0xff]
        %v596 = vld [vmem:[%s151 + $0xd10] sm:$0xff]
        %v597 = vld [vmem:[%s151 + $0xd18] sm:$0xff]
        %v598 = vld [vmem:[%s151 + $0xd20] sm:$0xff]
        %v599 = vld [vmem:[%s151 + $0xd28] sm:$0xff]
        %v600 = vld [vmem:[%s151 + $0xd30] sm:$0xff]
        %v601 = vld [vmem:[%s151 + $0xd38] sm:$0xff]
        %v602 = vld [vmem:[%s151 + $0xd40] sm:$0xff]
        %v603 = vld [vmem:[%s151 + $0xd48] sm:$0xff]
        %v604 = vld [vmem:[%s151 + $0xd50] sm:$0xff]
        %v605 = vld [vmem:[%s151 + $0xd58] sm:$0xff]
        %v606 = vld [vmem:[%s151 + $0xd60] sm:$0xff]
        %v607 = vld [vmem:[%s151 + $0xd68] sm:$0xff]
        %v608 = vld [vmem:[%s151 + $0xd70] sm:$0xff]
        %v609 = vld [vmem:[%s151 + $0xd78] sm:$0xff]
        %v610 = vld [vmem:[%s151 + $0xd80] sm:$0xff]
        %v611 = vld [vmem:[%s151 + $0xd88] sm:$0xff]
        %v612 = vld [vmem:[%s151 + $0xd90] sm:$0xff]
        %v613 = vld [vmem:[%s151 + $0xd98] sm:$0xff]
        %v614 = vld [vmem:[%s151 + $0xda0] sm:$0xff]
        %v615 = vld [vmem:[%s151 + $0xda8] sm:$0xff]
        %v616 = vld [vmem:[%s151 + $0xdb0] sm:$0xff]
        %v617 = vld [vmem:[%s151 + $0xdb8] sm:$0xff]
        %v618 = vld [vmem:[%s151 + $0xdc0] sm:$0xff]
        %v619 = vld [vmem:[%s151 + $0xdc8] sm:$0xff]
        %v620 = vld [vmem:[%s151 + $0xdd0] sm:$0xff]
        %v621 = vld [vmem:[%s151 + $0xdd8] sm:$0xff]
        %v622 = vld [vmem:[%s151 + $0xde0] sm:$0xff]
        %v623 = vld [vmem:[%s151 + $0xde8] sm:$0xff]
        %v624 = vld [vmem:[%s151 + $0xdf0] sm:$0xff]
        %v625 = vld [vmem:[%s151 + $0xdf8] sm:$0xff]
        %v626 = vld [vmem:[%s151 + $0xe00] sm:$0xff]
        %v627 = vld [vmem:[%s151 + $0xe08] sm:$0xff]
        %v628 = vld [vmem:[%s151 + $0xe10] sm:$0xff]
        %v629 = vld [vmem:[%s151 + $0xe18] sm:$0xff]
        %v630 = vld [vmem:[%s151 + $0xe20] sm:$0xff]
        %v631 = vld [vmem:[%s151 + $0xe28] sm:$0xff]
        %v632 = vld [vmem:[%s151 + $0xe30] sm:$0xff]
        %v633 = vld [vmem:[%s151 + $0xe38] sm:$0xff]
        %v634 = vld [vmem:[%s151 + $0xe40] sm:$0xff]
        %v635 = vld [vmem:[%s151 + $0xe48] sm:$0xff]
        %v636 = vld [vmem:[%s151 + $0xe50] sm:$0xff]
        %v637 = vld [vmem:[%s151 + $0xe58] sm:$0xff]
        %v638 = vld [vmem:[%s151 + $0xe60] sm:$0xff]
        %v639 = vld [vmem:[%s151 + $0xe68] sm:$0xff]
        %v640 = vld [vmem:[%s151 + $0xe70] sm:$0xff]
        %v641 = vld [vmem:[%s151 + $0xe78] sm:$0xff]
        %v642 = vld [vmem:[%s151 + $0xe80] sm:$0xff]
        %v643 = vld [vmem:[%s151 + $0xe88] sm:$0xff]
        %v644 = vld [vmem:[%s151 + $0xe90] sm:$0xff]
        %v645 = vld [vmem:[%s151 + $0xe98] sm:$0xff]
        %v646 = vld [vmem:[%s151 + $0xea0] sm:$0xff]
        %v647 = vld [vmem:[%s151 + $0xea8] sm:$0xff]
        %v648 = vld [vmem:[%s151 + $0xeb0] sm:$0xff]
        %v649 = vld [vmem:[%s151 + $0xeb8] sm:$0xff]
        %v650 = vld [vmem:[%s151 + $0xec0] sm:$0xff]
        %v651 = vld [vmem:[%s151 + $0xec8] sm:$0xff]
        %v652 = vld [vmem:[%s151 + $0xed0] sm:$0xff]
        %v653 = vld [vmem:[%s151 + $0xed8] sm:$0xff]
        %v654 = vld [vmem:[%s151 + $0xee0] sm:$0xff]
        %v655 = vld [vmem:[%s151 + $0xee8] sm:$0xff]
        %v656 = vld [vmem:[%s151 + $0xef0] sm:$0xff]
        %v657 = vld [vmem:[%s151 + $0xef8] sm:$0xff]
        %v658 = vld [vmem:[%s151 + $0xf00] sm:$0xff]
        %v659 = vld [vmem:[%s151 + $0xf08] sm:$0xff]
        %v660 = vld [vmem:[%s151 + $0xf10] sm:$0xff]
        %v661 = vld [vmem:[%s151 + $0xf18] sm:$0xff]
        %v662 = vld [vmem:[%s151 + $0xf20] sm:$0xff]
        %v663 = vld [vmem:[%s151 + $0xf28] sm:$0xff]
        %v664 = vld [vmem:[%s151 + $0xf30] sm:$0xff]
        %v665 = vld [vmem:[%s151 + $0xf38] sm:$0xff]
        %v666 = vld [vmem:[%s151 + $0xf40] sm:$0xff]
        %v667 = vld [vmem:[%s151 + $0xf48] sm:$0xff]
        %v668 = vld [vmem:[%s151 + $0xf50] sm:$0xff]
        %v669 = vld [vmem:[%s151 + $0xf58] sm:$0xff]
        %v670 = vld [vmem:[%s151 + $0xf60] sm:$0xff]
        %v671 = vld [vmem:[%s151 + $0xf68] sm:$0xff]
        %v672 = vld [vmem:[%s151 + $0xf70] sm:$0xff]
        %v673 = vld [vmem:[%s151 + $0xf78] sm:$0xff]
        %v674 = vld [vmem:[%s151 + $0xf80] sm:$0xff]
        %v675 = vld [vmem:[%s151 + $0xf88] sm:$0xff]
        %v676 = vld [vmem:[%s151 + $0xf90] sm:$0xff]
        %v677 = vld [vmem:[%s151 + $0xf98] sm:$0xff]
        %v678 = vld [vmem:[%s151 + $0xfa0] sm:$0xff]
        %v679 = vld [vmem:[%s151 + $0xfa8] sm:$0xff]
        %v680 = vld [vmem:[%s151 + $0xfb0] sm:$0xff]
        %v681 = vld [vmem:[%s151 + $0xfb8] sm:$0xff]
        %v682 = vld [vmem:[%s151 + $0xfc0] sm:$0xff]
        %v683 = vld [vmem:[%s151 + $0xfc8] sm:$0xff]
        %v684 = vld [vmem:[%s151 + $0xfd0] sm:$0xff]
        %v685 = vld [vmem:[%s151 + $0xfd8] sm:$0xff]
        %v686 = vld [vmem:[%s151 + $0xfe0] sm:$0xff]
        %v687 = vld [vmem:[%s151 + $0xfe8] sm:$0xff]
        %v688 = vld [vmem:[%s151 + $0xff0] sm:$0xff]
        %v689 = vld [vmem:[%s151 + $0xff8] sm:$0xff]
        %v690 = vld [vmem:[#allocation5] sm:$0x3]
        %v692 = vlaneseq
        %v693 = vshrl.u32 %v692, 7
        %v694 = vsub.s32 0, %v693
        %v695 = vrot.slane %v690, %v694
        %v696 = vlaneseq
        %v697 = vshrl.u32 %v696, 7
        %v698 = vsub.s32 1, %v697
        %v699 = vrot.slane %v690, %v698
        %v702 = vadd.f32 %v178, %v695
        %v703 = vadd.f32 %v179, %v699
        %v704 = vadd.f32 %v180, %v695
        %v705 = vadd.f32 %v181, %v699
        %v706 = vadd.f32 %v182, %v695
        %v707 = vadd.f32 %v183, %v699
        %v708 = vadd.f32 %v184, %v695
        %v709 = vadd.f32 %v185, %v699
        %v710 = vadd.f32 %v186, %v695
        %v711 = vadd.f32 %v187, %v699
        %v712 = vadd.f32 %v188, %v695
        %v713 = vadd.f32 %v189, %v699
        %v714 = vadd.f32 %v190, %v695
        %v715 = vadd.f32 %v191, %v699
        %v716 = vadd.f32 %v192, %v695
        %v717 = vadd.f32 %v193, %v699
        %v718 = vadd.f32 %v194, %v695
        %v719 = vadd.f32 %v195, %v699
        %v720 = vadd.f32 %v196, %v695
        %v721 = vadd.f32 %v197, %v699
        %v722 = vadd.f32 %v198, %v695
        %v723 = vadd.f32 %v199, %v699
        %v724 = vadd.f32 %v200, %v695
        %v725 = vadd.f32 %v201, %v699
        %v726 = vadd.f32 %v202, %v695
        %v727 = vadd.f32 %v203, %v699
        %v728 = vadd.f32 %v204, %v695
        %v729 = vadd.f32 %v205, %v699
        %v730 = vadd.f32 %v206, %v695
        %v731 = vadd.f32 %v207, %v699
        %v732 = vadd.f32 %v208, %v695
        %v733 = vadd.f32 %v209, %v699
        %v734 = vadd.f32 %v210, %v695
        %v735 = vadd.f32 %v211, %v699
        %v736 = vadd.f32 %v212, %v695
        %v737 = vadd.f32 %v213, %v699
        %v738 = vadd.f32 %v214, %v695
        %v739 = vadd.f32 %v215, %v699
        %v740 = vadd.f32 %v216, %v695
        %v741 = vadd.f32 %v217, %v699
        %v742 = vadd.f32 %v218, %v695
        %v743 = vadd.f32 %v219, %v699
        %v744 = vadd.f32 %v220, %v695
        %v745 = vadd.f32 %v221, %v699
        %v746 = vadd.f32 %v222, %v695
        %v747 = vadd.f32 %v223, %v699
        %v748 = vadd.f32 %v224, %v695
        %v749 = vadd.f32 %v225, %v699
        %v750 = vadd.f32 %v226, %v695
        %v751 = vadd.f32 %v227, %v699
        %v752 = vadd.f32 %v228, %v695
        %v753 = vadd.f32 %v229, %v699
        %v754 = vadd.f32 %v230, %v695
        %v755 = vadd.f32 %v231, %v699
        %v756 = vadd.f32 %v232, %v695
        %v757 = vadd.f32 %v233, %v699
        %v758 = vadd.f32 %v234, %v695
        %v759 = vadd.f32 %v235, %v699
        %v760 = vadd.f32 %v236, %v695
        %v761 = vadd.f32 %v237, %v699
        %v762 = vadd.f32 %v238, %v695
        %v763 = vadd.f32 %v239, %v699
        %v764 = vadd.f32 %v240, %v695
        %v765 = vadd.f32 %v241, %v699
        %v766 = vadd.f32 %v242, %v695
        %v767 = vadd.f32 %v243, %v699
        %v768 = vadd.f32 %v244, %v695
        %v769 = vadd.f32 %v245, %v699
        %v770 = vadd.f32 %v246, %v695
        %v771 = vadd.f32 %v247, %v699
        %v772 = vadd.f32 %v248, %v695
        %v773 = vadd.f32 %v249, %v699
        %v774 = vadd.f32 %v250, %v695
        %v775 = vadd.f32 %v251, %v699
        %v776 = vadd.f32 %v252, %v695
        %v777 = vadd.f32 %v253, %v699
        %v778 = vadd.f32 %v254, %v695
        %v779 = vadd.f32 %v255, %v699
        %v780 = vadd.f32 %v256, %v695
        %v781 = vadd.f32 %v257, %v699
        %v782 = vadd.f32 %v258, %v695
        %v783 = vadd.f32 %v259, %v699
        %v784 = vadd.f32 %v260, %v695
        %v785 = vadd.f32 %v261, %v699
        %v786 = vadd.f32 %v262, %v695
        %v787 = vadd.f32 %v263, %v699
        %v788 = vadd.f32 %v264, %v695
        %v789 = vadd.f32 %v265, %v699
        %v790 = vadd.f32 %v266, %v695
        %v791 = vadd.f32 %v267, %v699
        %v792 = vadd.f32 %v268, %v695
        %v793 = vadd.f32 %v269, %v699
        %v794 = vadd.f32 %v270, %v695
        %v795 = vadd.f32 %v271, %v699
        %v796 = vadd.f32 %v272, %v695
        %v797 = vadd.f32 %v273, %v699
        %v798 = vadd.f32 %v274, %v695
        %v799 = vadd.f32 %v275, %v699
        %v800 = vadd.f32 %v276, %v695
        %v801 = vadd.f32 %v277, %v699
        %v802 = vadd.f32 %v278, %v695
        %v803 = vadd.f32 %v279, %v699
        %v804 = vadd.f32 %v280, %v695
        %v805 = vadd.f32 %v281, %v699
        %v806 = vadd.f32 %v282, %v695
        %v807 = vadd.f32 %v283, %v699
        %v808 = vadd.f32 %v284, %v695
        %v809 = vadd.f32 %v285, %v699
        %v810 = vadd.f32 %v286, %v695
        %v811 = vadd.f32 %v287, %v699
        %v812 = vadd.f32 %v288, %v695
        %v813 = vadd.f32 %v289, %v699
        %v814 = vadd.f32 %v290, %v695
        %v815 = vadd.f32 %v291, %v699
        %v816 = vadd.f32 %v292, %v695
        %v817 = vadd.f32 %v293, %v699
        %v818 = vadd.f32 %v294, %v695
        %v819 = vadd.f32 %v295, %v699
        %v820 = vadd.f32 %v296, %v695
        %v821 = vadd.f32 %v297, %v699
        %v822 = vadd.f32 %v298, %v695
        %v823 = vadd.f32 %v299, %v699
        %v824 = vadd.f32 %v300, %v695
        %v825 = vadd.f32 %v301, %v699
        %v826 = vadd.f32 %v302, %v695
        %v827 = vadd.f32 %v303, %v699
        %v828 = vadd.f32 %v304, %v695
        %v829 = vadd.f32 %v305, %v699
        %v830 = vadd.f32 %v306, %v695
        %v831 = vadd.f32 %v307, %v699
        %v832 = vadd.f32 %v308, %v695
        %v833 = vadd.f32 %v309, %v699
        %v834 = vadd.f32 %v310, %v695
        %v835 = vadd.f32 %v311, %v699
        %v836 = vadd.f32 %v312, %v695
        %v837 = vadd.f32 %v313, %v699
        %v838 = vadd.f32 %v314, %v695
        %v839 = vadd.f32 %v315, %v699
        %v840 = vadd.f32 %v316, %v695
        %v841 = vadd.f32 %v317, %v699
        %v842 = vadd.f32 %v318, %v695
        %v843 = vadd.f32 %v319, %v699
        %v844 = vadd.f32 %v320, %v695
        %v845 = vadd.f32 %v321, %v699
        %v846 = vadd.f32 %v322, %v695
        %v847 = vadd.f32 %v323, %v699
        %v848 = vadd.f32 %v324, %v695
        %v849 = vadd.f32 %v325, %v699
        %v850 = vadd.f32 %v326, %v695
        %v851 = vadd.f32 %v327, %v699
        %v852 = vadd.f32 %v328, %v695
        %v853 = vadd.f32 %v329, %v699
        %v854 = vadd.f32 %v330, %v695
        %v855 = vadd.f32 %v331, %v699
        %v856 = vadd.f32 %v332, %v695
        %v857 = vadd.f32 %v333, %v699
        %v858 = vadd.f32 %v334, %v695
        %v859 = vadd.f32 %v335, %v699
        %v860 = vadd.f32 %v336, %v695
        %v861 = vadd.f32 %v337, %v699
        %v862 = vadd.f32 %v338, %v695
        %v863 = vadd.f32 %v339, %v699
        %v864 = vadd.f32 %v340, %v695
        %v865 = vadd.f32 %v341, %v699
        %v866 = vadd.f32 %v342, %v695
        %v867 = vadd.f32 %v343, %v699
        %v868 = vadd.f32 %v344, %v695
        %v869 = vadd.f32 %v345, %v699
        %v870 = vadd.f32 %v346, %v695
        %v871 = vadd.f32 %v347, %v699
        %v872 = vadd.f32 %v348, %v695
        %v873 = vadd.f32 %v349, %v699
        %v874 = vadd.f32 %v350, %v695
        %v875 = vadd.f32 %v351, %v699
        %v876 = vadd.f32 %v352, %v695
        %v877 = vadd.f32 %v353, %v699
        %v878 = vadd.f32 %v354, %v695
        %v879 = vadd.f32 %v355, %v699
        %v880 = vadd.f32 %v356, %v695
        %v881 = vadd.f32 %v357, %v699
        %v882 = vadd.f32 %v358, %v695
        %v883 = vadd.f32 %v359, %v699
        %v884 = vadd.f32 %v360, %v695
        %v885 = vadd.f32 %v361, %v699
        %v886 = vadd.f32 %v362, %v695
        %v887 = vadd.f32 %v363, %v699
        %v888 = vadd.f32 %v364, %v695
        %v889 = vadd.f32 %v365, %v699
        %v890 = vadd.f32 %v366, %v695
        %v891 = vadd.f32 %v367, %v699
        %v892 = vadd.f32 %v368, %v695
        %v893 = vadd.f32 %v369, %v699
        %v894 = vadd.f32 %v370, %v695
        %v895 = vadd.f32 %v371, %v699
        %v896 = vadd.f32 %v372, %v695
        %v897 = vadd.f32 %v373, %v699
        %v898 = vadd.f32 %v374, %v695
        %v899 = vadd.f32 %v375, %v699
        %v900 = vadd.f32 %v376, %v695
        %v901 = vadd.f32 %v377, %v699
        %v902 = vadd.f32 %v378, %v695
        %v903 = vadd.f32 %v379, %v699
        %v904 = vadd.f32 %v380, %v695
        %v905 = vadd.f32 %v381, %v699
        %v906 = vadd.f32 %v382, %v695
        %v907 = vadd.f32 %v383, %v699
        %v908 = vadd.f32 %v384, %v695
        %v909 = vadd.f32 %v385, %v699
        %v910 = vadd.f32 %v386, %v695
        %v911 = vadd.f32 %v387, %v699
        %v912 = vadd.f32 %v388, %v695
        %v913 = vadd.f32 %v389, %v699
        %v914 = vadd.f32 %v390, %v695
        %v915 = vadd.f32 %v391, %v699
        %v916 = vadd.f32 %v392, %v695
        %v917 = vadd.f32 %v393, %v699
        %v918 = vadd.f32 %v394, %v695
        %v919 = vadd.f32 %v395, %v699
        %v920 = vadd.f32 %v396, %v695
        %v921 = vadd.f32 %v397, %v699
        %v922 = vadd.f32 %v398, %v695
        %v923 = vadd.f32 %v399, %v699
        %v924 = vadd.f32 %v400, %v695
        %v925 = vadd.f32 %v401, %v699
        %v926 = vadd.f32 %v402, %v695
        %v927 = vadd.f32 %v403, %v699
        %v928 = vadd.f32 %v404, %v695
        %v929 = vadd.f32 %v405, %v699
        %v930 = vadd.f32 %v406, %v695
        %v931 = vadd.f32 %v407, %v699
        %v932 = vadd.f32 %v408, %v695
        %v933 = vadd.f32 %v409, %v699
        %v934 = vadd.f32 %v410, %v695
        %v935 = vadd.f32 %v411, %v699
        %v936 = vadd.f32 %v412, %v695
        %v937 = vadd.f32 %v413, %v699
        %v938 = vadd.f32 %v414, %v695
        %v939 = vadd.f32 %v415, %v699
        %v940 = vadd.f32 %v416, %v695
        %v941 = vadd.f32 %v417, %v699
        %v942 = vadd.f32 %v418, %v695
        %v943 = vadd.f32 %v419, %v699
        %v944 = vadd.f32 %v420, %v695
        %v945 = vadd.f32 %v421, %v699
        %v946 = vadd.f32 %v422, %v695
        %v947 = vadd.f32 %v423, %v699
        %v948 = vadd.f32 %v424, %v695
        %v949 = vadd.f32 %v425, %v699
        %v950 = vadd.f32 %v426, %v695
        %v951 = vadd.f32 %v427, %v699
        %v952 = vadd.f32 %v428, %v695
        %v953 = vadd.f32 %v429, %v699
        %v954 = vadd.f32 %v430, %v695
        %v955 = vadd.f32 %v431, %v699
        %v956 = vadd.f32 %v432, %v695
        %v957 = vadd.f32 %v433, %v699
        %v958 = vadd.f32 %v434, %v695
        %v959 = vadd.f32 %v435, %v699
        %v960 = vadd.f32 %v436, %v695
        %v961 = vadd.f32 %v437, %v699
        %v962 = vadd.f32 %v438, %v695
        %v963 = vadd.f32 %v439, %v699
        %v964 = vadd.f32 %v440, %v695
        %v965 = vadd.f32 %v441, %v699
        %v966 = vadd.f32 %v442, %v695
        %v967 = vadd.f32 %v443, %v699
        %v968 = vadd.f32 %v444, %v695
        %v969 = vadd.f32 %v445, %v699
        %v970 = vadd.f32 %v446, %v695
        %v971 = vadd.f32 %v447, %v699
        %v972 = vadd.f32 %v448, %v695
        %v973 = vadd.f32 %v449, %v699
        %v974 = vadd.f32 %v450, %v695
        %v975 = vadd.f32 %v451, %v699
        %v976 = vadd.f32 %v452, %v695
        %v977 = vadd.f32 %v453, %v699
        %v978 = vadd.f32 %v454, %v695
        %v979 = vadd.f32 %v455, %v699
        %v980 = vadd.f32 %v456, %v695
        %v981 = vadd.f32 %v457, %v699
        %v982 = vadd.f32 %v458, %v695
        %v983 = vadd.f32 %v459, %v699
        %v984 = vadd.f32 %v460, %v695
        %v985 = vadd.f32 %v461, %v699
        %v986 = vadd.f32 %v462, %v695
        %v987 = vadd.f32 %v463, %v699
        %v988 = vadd.f32 %v464, %v695
        %v989 = vadd.f32 %v465, %v699
        %v990 = vadd.f32 %v466, %v695
        %v991 = vadd.f32 %v467, %v699
        %v992 = vadd.f32 %v468, %v695
        %v993 = vadd.f32 %v469, %v699
        %v994 = vadd.f32 %v470, %v695
        %v995 = vadd.f32 %v471, %v699
        %v996 = vadd.f32 %v472, %v695
        %v997 = vadd.f32 %v473, %v699
        %v998 = vadd.f32 %v474, %v695
        %v999 = vadd.f32 %v475, %v699
        %v1000 = vadd.f32 %v476, %v695
        %v1001 = vadd.f32 %v477, %v699
        %v1002 = vadd.f32 %v478, %v695
        %v1003 = vadd.f32 %v479, %v699
        %v1004 = vadd.f32 %v480, %v695
        %v1005 = vadd.f32 %v481, %v699
        %v1006 = vadd.f32 %v482, %v695
        %v1007 = vadd.f32 %v483, %v699
        %v1008 = vadd.f32 %v484, %v695
        %v1009 = vadd.f32 %v485, %v699
        %v1010 = vadd.f32 %v486, %v695
        %v1011 = vadd.f32 %v487, %v699
        %v1012 = vadd.f32 %v488, %v695
        %v1013 = vadd.f32 %v489, %v699
        %v1014 = vadd.f32 %v490, %v695
        %v1015 = vadd.f32 %v491, %v699
        %v1016 = vadd.f32 %v492, %v695
        %v1017 = vadd.f32 %v493, %v699
        %v1018 = vadd.f32 %v494, %v695
        %v1019 = vadd.f32 %v495, %v699
        %v1020 = vadd.f32 %v496, %v695
        %v1021 = vadd.f32 %v497, %v699
        %v1022 = vadd.f32 %v498, %v695
        %v1023 = vadd.f32 %v499, %v699
        %v1024 = vadd.f32 %v500, %v695
        %v1025 = vadd.f32 %v501, %v699
        %v1026 = vadd.f32 %v502, %v695
        %v1027 = vadd.f32 %v503, %v699
        %v1028 = vadd.f32 %v504, %v695
        %v1029 = vadd.f32 %v505, %v699
        %v1030 = vadd.f32 %v506, %v695
        %v1031 = vadd.f32 %v507, %v699
        %v1032 = vadd.f32 %v508, %v695
        %v1033 = vadd.f32 %v509, %v699
        %v1034 = vadd.f32 %v510, %v695
        %v1035 = vadd.f32 %v511, %v699
        %v1036 = vadd.f32 %v512, %v695
        %v1037 = vadd.f32 %v513, %v699
        %v1038 = vadd.f32 %v514, %v695
        %v1039 = vadd.f32 %v515, %v699
        %v1040 = vadd.f32 %v516, %v695
        %v1041 = vadd.f32 %v517, %v699
        %v1042 = vadd.f32 %v518, %v695
        %v1043 = vadd.f32 %v519, %v699
        %v1044 = vadd.f32 %v520, %v695
        %v1045 = vadd.f32 %v521, %v699
        %v1046 = vadd.f32 %v522, %v695
        %v1047 = vadd.f32 %v523, %v699
        %v1048 = vadd.f32 %v524, %v695
        %v1049 = vadd.f32 %v525, %v699
        %v1050 = vadd.f32 %v526, %v695
        %v1051 = vadd.f32 %v527, %v699
        %v1052 = vadd.f32 %v528, %v695
        %v1053 = vadd.f32 %v529, %v699
        %v1054 = vadd.f32 %v530, %v695
        %v1055 = vadd.f32 %v531, %v699
        %v1056 = vadd.f32 %v532, %v695
        %v1057 = vadd.f32 %v533, %v699
        %v1058 = vadd.f32 %v534, %v695
        %v1059 = vadd.f32 %v535, %v699
        %v1060 = vadd.f32 %v536, %v695
        %v1061 = vadd.f32 %v537, %v699
        %v1062 = vadd.f32 %v538, %v695
        %v1063 = vadd.f32 %v539, %v699
        %v1064 = vadd.f32 %v540, %v695
        %v1065 = vadd.f32 %v541, %v699
        %v1066 = vadd.f32 %v542, %v695
        %v1067 = vadd.f32 %v543, %v699
        %v1068 = vadd.f32 %v544, %v695
        %v1069 = vadd.f32 %v545, %v699
        %v1070 = vadd.f32 %v546, %v695
        %v1071 = vadd.f32 %v547, %v699
        %v1072 = vadd.f32 %v548, %v695
        %v1073 = vadd.f32 %v549, %v699
        %v1074 = vadd.f32 %v550, %v695
        %v1075 = vadd.f32 %v551, %v699
        %v1076 = vadd.f32 %v552, %v695
        %v1077 = vadd.f32 %v553, %v699
        %v1078 = vadd.f32 %v554, %v695
        %v1079 = vadd.f32 %v555, %v699
        %v1080 = vadd.f32 %v556, %v695
        %v1081 = vadd.f32 %v557, %v699
        %v1082 = vadd.f32 %v558, %v695
        %v1083 = vadd.f32 %v559, %v699
        %v1084 = vadd.f32 %v560, %v695
        %v1085 = vadd.f32 %v561, %v699
        %v1086 = vadd.f32 %v562, %v695
        %v1087 = vadd.f32 %v563, %v699
        %v1088 = vadd.f32 %v564, %v695
        %v1089 = vadd.f32 %v565, %v699
        %v1090 = vadd.f32 %v566, %v695
        %v1091 = vadd.f32 %v567, %v699
        %v1092 = vadd.f32 %v568, %v695
        %v1093 = vadd.f32 %v569, %v699
        %v1094 = vadd.f32 %v570, %v695
        %v1095 = vadd.f32 %v571, %v699
        %v1096 = vadd.f32 %v572, %v695
        %v1097 = vadd.f32 %v573, %v699
        %v1098 = vadd.f32 %v574, %v695
        %v1099 = vadd.f32 %v575, %v699
        %v1100 = vadd.f32 %v576, %v695
        %v1101 = vadd.f32 %v577, %v699
        %v1102 = vadd.f32 %v578, %v695
        %v1103 = vadd.f32 %v579, %v699
        %v1104 = vadd.f32 %v580, %v695
        %v1105 = vadd.f32 %v581, %v699
        %v1106 = vadd.f32 %v582, %v695
        %v1107 = vadd.f32 %v583, %v699
        %v1108 = vadd.f32 %v584, %v695
        %v1109 = vadd.f32 %v585, %v699
        %v1110 = vadd.f32 %v586, %v695
        %v1111 = vadd.f32 %v587, %v699
        %v1112 = vadd.f32 %v588, %v695
        %v1113 = vadd.f32 %v589, %v699
        %v1114 = vadd.f32 %v590, %v695
        %v1115 = vadd.f32 %v591, %v699
        %v1116 = vadd.f32 %v592, %v695
        %v1117 = vadd.f32 %v593, %v699
        %v1118 = vadd.f32 %v594, %v695
        %v1119 = vadd.f32 %v595, %v699
        %v1120 = vadd.f32 %v596, %v695
        %v1121 = vadd.f32 %v597, %v699
        %v1122 = vadd.f32 %v598, %v695
        %v1123 = vadd.f32 %v599, %v699
        %v1124 = vadd.f32 %v600, %v695
        %v1125 = vadd.f32 %v601, %v699
        %v1126 = vadd.f32 %v602, %v695
        %v1127 = vadd.f32 %v603, %v699
        %v1128 = vadd.f32 %v604, %v695
        %v1129 = vadd.f32 %v605, %v699
        %v1130 = vadd.f32 %v606, %v695
        %v1131 = vadd.f32 %v607, %v699
        %v1132 = vadd.f32 %v608, %v695
        %v1133 = vadd.f32 %v609, %v699
        %v1134 = vadd.f32 %v610, %v695
        %v1135 = vadd.f32 %v611, %v699
        %v1136 = vadd.f32 %v612, %v695
        %v1137 = vadd.f32 %v613, %v699
        %v1138 = vadd.f32 %v614, %v695
        %v1139 = vadd.f32 %v615, %v699
        %v1140 = vadd.f32 %v616, %v695
        %v1141 = vadd.f32 %v617, %v699
        %v1142 = vadd.f32 %v618, %v695
        %v1143 = vadd.f32 %v619, %v699
        %v1144 = vadd.f32 %v620, %v695
        %v1145 = vadd.f32 %v621, %v699
        %v1146 = vadd.f32 %v622, %v695
        %v1147 = vadd.f32 %v623, %v699
        %v1148 = vadd.f32 %v624, %v695
        %v1149 = vadd.f32 %v625, %v699
        %v1150 = vadd.f32 %v626, %v695
        %v1151 = vadd.f32 %v627, %v699
        %v1152 = vadd.f32 %v628, %v695
        %v1153 = vadd.f32 %v629, %v699
        %v1154 = vadd.f32 %v630, %v695
        %v1155 = vadd.f32 %v631, %v699
        %v1156 = vadd.f32 %v632, %v695
        %v1157 = vadd.f32 %v633, %v699
        %v1158 = vadd.f32 %v634, %v695
        %v1159 = vadd.f32 %v635, %v699
        %v1160 = vadd.f32 %v636, %v695
        %v1161 = vadd.f32 %v637, %v699
        %v1162 = vadd.f32 %v638, %v695
        %v1163 = vadd.f32 %v639, %v699
        %v1164 = vadd.f32 %v640, %v695
        %v1165 = vadd.f32 %v641, %v699
        %v1166 = vadd.f32 %v642, %v695
        %v1167 = vadd.f32 %v643, %v699
        %v1168 = vadd.f32 %v644, %v695
        %v1169 = vadd.f32 %v645, %v699
        %v1170 = vadd.f32 %v646, %v695
        %v1171 = vadd.f32 %v647, %v699
        %v1172 = vadd.f32 %v648, %v695
        %v1173 = vadd.f32 %v649, %v699
        %v1174 = vadd.f32 %v650, %v695
        %v1175 = vadd.f32 %v651, %v699
        %v1176 = vadd.f32 %v652, %v695
        %v1177 = vadd.f32 %v653, %v699
        %v1178 = vadd.f32 %v654, %v695
        %v1179 = vadd.f32 %v655, %v699
        %v1180 = vadd.f32 %v656, %v695
        %v1181 = vadd.f32 %v657, %v699
        %v1182 = vadd.f32 %v658, %v695
        %v1183 = vadd.f32 %v659, %v699
        %v1184 = vadd.f32 %v660, %v695
        %v1185 = vadd.f32 %v661, %v699
        %v1186 = vadd.f32 %v662, %v695
        %v1187 = vadd.f32 %v663, %v699
        %v1188 = vadd.f32 %v664, %v695
        %v1189 = vadd.f32 %v665, %v699
        %v1190 = vadd.f32 %v666, %v695
        %v1191 = vadd.f32 %v667, %v699
        %v1192 = vadd.f32 %v668, %v695
        %v1193 = vadd.f32 %v669, %v699
        %v1194 = vadd.f32 %v670, %v695
        %v1195 = vadd.f32 %v671, %v699
        %v1196 = vadd.f32 %v672, %v695
        %v1197 = vadd.f32 %v673, %v699
        %v1198 = vadd.f32 %v674, %v695
        %v1199 = vadd.f32 %v675, %v699
        %v1200 = vadd.f32 %v676, %v695
        %v1201 = vadd.f32 %v677, %v699
        %v1202 = vadd.f32 %v678, %v695
        %v1203 = vadd.f32 %v679, %v699
        %v1204 = vadd.f32 %v680, %v695
        %v1205 = vadd.f32 %v681, %v699
        %v1206 = vadd.f32 %v682, %v695
        %v1207 = vadd.f32 %v683, %v699
        %v1208 = vadd.f32 %v684, %v695
        %v1209 = vadd.f32 %v685, %v699
        %v1210 = vadd.f32 %v686, %v695
        %v1211 = vadd.f32 %v687, %v699
        %v1212 = vadd.f32 %v688, %v695
        %v1213 = vadd.f32 %v689, %v699
        %1214 = vst [vmem:[%s175] sm:$0xff] %v702
        %1215 = vst [vmem:[%s175 + $0x8] sm:$0xff] %v703
        %1216 = vst [vmem:[%s175 + $0x10] sm:$0xff] %v704
        %1217 = vst [vmem:[%s175 + $0x18] sm:$0xff] %v705
        %1218 = vst [vmem:[%s175 + $0x20] sm:$0xff] %v706
        %1219 = vst [vmem:[%s175 + $0x28] sm:$0xff] %v707
        %1220 = vst [vmem:[%s175 + $0x30] sm:$0xff] %v708
        %1221 = vst [vmem:[%s175 + $0x38] sm:$0xff] %v709
        %1222 = vst [vmem:[%s175 + $0x40] sm:$0xff] %v710
        %1223 = vst [vmem:[%s175 + $0x48] sm:$0xff] %v711
        %1224 = vst [vmem:[%s175 + $0x50] sm:$0xff] %v712
        %1225 = vst [vmem:[%s175 + $0x58] sm:$0xff] %v713
        %1226 = vst [vmem:[%s175 + $0x60] sm:$0xff] %v714
        %1227 = vst [vmem:[%s175 + $0x68] sm:$0xff] %v715
        %1228 = vst [vmem:[%s175 + $0x70] sm:$0xff] %v716
        %1229 = vst [vmem:[%s175 + $0x78] sm:$0xff] %v717
        %1230 = vst [vmem:[%s175 + $0x80] sm:$0xff] %v718
        %1231 = vst [vmem:[%s175 + $0x88] sm:$0xff] %v719
        %1232 = vst [vmem:[%s175 + $0x90] sm:$0xff] %v720
        %1233 = vst [vmem:[%s175 + $0x98] sm:$0xff] %v721
        %1234 = vst [vmem:[%s175 + $0xa0] sm:$0xff] %v722
        %1235 = vst [vmem:[%s175 + $0xa8] sm:$0xff] %v723
        %1236 = vst [vmem:[%s175 + $0xb0] sm:$0xff] %v724
        %1237 = vst [vmem:[%s175 + $0xb8] sm:$0xff] %v725
        %1238 = vst [vmem:[%s175 + $0xc0] sm:$0xff] %v726
        %1239 = vst [vmem:[%s175 + $0xc8] sm:$0xff] %v727
        %1240 = vst [vmem:[%s175 + $0xd0] sm:$0xff] %v728
        %1241 = vst [vmem:[%s175 + $0xd8] sm:$0xff] %v729
        %1242 = vst [vmem:[%s175 + $0xe0] sm:$0xff] %v730
        %1243 = vst [vmem:[%s175 + $0xe8] sm:$0xff] %v731
        %1244 = vst [vmem:[%s175 + $0xf0] sm:$0xff] %v732
        %1245 = vst [vmem:[%s175 + $0xf8] sm:$0xff] %v733
        %1246 = vst [vmem:[%s175 + $0x100] sm:$0xff] %v734
        %1247 = vst [vmem:[%s175 + $0x108] sm:$0xff] %v735
        %1248 = vst [vmem:[%s175 + $0x110] sm:$0xff] %v736
        %1249 = vst [vmem:[%s175 + $0x118] sm:$0xff] %v737
        %1250 = vst [vmem:[%s175 + $0x120] sm:$0xff] %v738
        %1251 = vst [vmem:[%s175 + $0x128] sm:$0xff] %v739
        %1252 = vst [vmem:[%s175 + $0x130] sm:$0xff] %v740
        %1253 = vst [vmem:[%s175 + $0x138] sm:$0xff] %v741
        %1254 = vst [vmem:[%s175 + $0x140] sm:$0xff] %v742
        %1255 = vst [vmem:[%s175 + $0x148] sm:$0xff] %v743
        %1256 = vst [vmem:[%s175 + $0x150] sm:$0xff] %v744
        %1257 = vst [vmem:[%s175 + $0x158] sm:$0xff] %v745
        %1258 = vst [vmem:[%s175 + $0x160] sm:$0xff] %v746
        %1259 = vst [vmem:[%s175 + $0x168] sm:$0xff] %v747
        %1260 = vst [vmem:[%s175 + $0x170] sm:$0xff] %v748
        %1261 = vst [vmem:[%s175 + $0x178] sm:$0xff] %v749
        %1262 = vst [vmem:[%s175 + $0x180] sm:$0xff] %v750
        %1263 = vst [vmem:[%s175 + $0x188] sm:$0xff] %v751
        %1264 = vst [vmem:[%s175 + $0x190] sm:$0xff] %v752
        %1265 = vst [vmem:[%s175 + $0x198] sm:$0xff] %v753
        %1266 = vst [vmem:[%s175 + $0x1a0] sm:$0xff] %v754
        %1267 = vst [vmem:[%s175 + $0x1a8] sm:$0xff] %v755
        %1268 = vst [vmem:[%s175 + $0x1b0] sm:$0xff] %v756
        %1269 = vst [vmem:[%s175 + $0x1b8] sm:$0xff] %v757
        %1270 = vst [vmem:[%s175 + $0x1c0] sm:$0xff] %v758
        %1271 = vst [vmem:[%s175 + $0x1c8] sm:$0xff] %v759
        %1272 = vst [vmem:[%s175 + $0x1d0] sm:$0xff] %v760
        %1273 = vst [vmem:[%s175 + $0x1d8] sm:$0xff] %v761
        %1274 = vst [vmem:[%s175 + $0x1e0] sm:$0xff] %v762
        %1275 = vst [vmem:[%s175 + $0x1e8] sm:$0xff] %v763
        %1276 = vst [vmem:[%s175 + $0x1f0] sm:$0xff] %v764
        %1277 = vst [vmem:[%s175 + $0x1f8] sm:$0xff] %v765
        %1278 = vst [vmem:[%s175 + $0x200] sm:$0xff] %v766
        %1279 = vst [vmem:[%s175 + $0x208] sm:$0xff] %v767
        %1280 = vst [vmem:[%s175 + $0x210] sm:$0xff] %v768
        %1281 = vst [vmem:[%s175 + $0x218] sm:$0xff] %v769
        %1282 = vst [vmem:[%s175 + $0x220] sm:$0xff] %v770
        %1283 = vst [vmem:[%s175 + $0x228] sm:$0xff] %v771
        %1284 = vst [vmem:[%s175 + $0x230] sm:$0xff] %v772
        %1285 = vst [vmem:[%s175 + $0x238] sm:$0xff] %v773
        %1286 = vst [vmem:[%s175 + $0x240] sm:$0xff] %v774
        %1287 = vst [vmem:[%s175 + $0x248] sm:$0xff] %v775
        %1288 = vst [vmem:[%s175 + $0x250] sm:$0xff] %v776
        %1289 = vst [vmem:[%s175 + $0x258] sm:$0xff] %v777
        %1290 = vst [vmem:[%s175 + $0x260] sm:$0xff] %v778
        %1291 = vst [vmem:[%s175 + $0x268] sm:$0xff] %v779
        %1292 = vst [vmem:[%s175 + $0x270] sm:$0xff] %v780
        %1293 = vst [vmem:[%s175 + $0x278] sm:$0xff] %v781
        %1294 = vst [vmem:[%s175 + $0x280] sm:$0xff] %v782
        %1295 = vst [vmem:[%s175 + $0x288] sm:$0xff] %v783
        %1296 = vst [vmem:[%s175 + $0x290] sm:$0xff] %v784
        %1297 = vst [vmem:[%s175 + $0x298] sm:$0xff] %v785
        %1298 = vst [vmem:[%s175 + $0x2a0] sm:$0xff] %v786
        %1299 = vst [vmem:[%s175 + $0x2a8] sm:$0xff] %v787
        %1300 = vst [vmem:[%s175 + $0x2b0] sm:$0xff] %v788
        %1301 = vst [vmem:[%s175 + $0x2b8] sm:$0xff] %v789
        %1302 = vst [vmem:[%s175 + $0x2c0] sm:$0xff] %v790
        %1303 = vst [vmem:[%s175 + $0x2c8] sm:$0xff] %v791
        %1304 = vst [vmem:[%s175 + $0x2d0] sm:$0xff] %v792
        %1305 = vst [vmem:[%s175 + $0x2d8] sm:$0xff] %v793
        %1306 = vst [vmem:[%s175 + $0x2e0] sm:$0xff] %v794
        %1307 = vst [vmem:[%s175 + $0x2e8] sm:$0xff] %v795
        %1308 = vst [vmem:[%s175 + $0x2f0] sm:$0xff] %v796
        %1309 = vst [vmem:[%s175 + $0x2f8] sm:$0xff] %v797
        %1310 = vst [vmem:[%s175 + $0x300] sm:$0xff] %v798
        %1311 = vst [vmem:[%s175 + $0x308] sm:$0xff] %v799
        %1312 = vst [vmem:[%s175 + $0x310] sm:$0xff] %v800
        %1313 = vst [vmem:[%s175 + $0x318] sm:$0xff] %v801
        %1314 = vst [vmem:[%s175 + $0x320] sm:$0xff] %v802
        %1315 = vst [vmem:[%s175 + $0x328] sm:$0xff] %v803
        %1316 = vst [vmem:[%s175 + $0x330] sm:$0xff] %v804
        %1317 = vst [vmem:[%s175 + $0x338] sm:$0xff] %v805
        %1318 = vst [vmem:[%s175 + $0x340] sm:$0xff] %v806
        %1319 = vst [vmem:[%s175 + $0x348] sm:$0xff] %v807
        %1320 = vst [vmem:[%s175 + $0x350] sm:$0xff] %v808
        %1321 = vst [vmem:[%s175 + $0x358] sm:$0xff] %v809
        %1322 = vst [vmem:[%s175 + $0x360] sm:$0xff] %v810
        %1323 = vst [vmem:[%s175 + $0x368] sm:$0xff] %v811
        %1324 = vst [vmem:[%s175 + $0x370] sm:$0xff] %v812
        %1325 = vst [vmem:[%s175 + $0x378] sm:$0xff] %v813
        %1326 = vst [vmem:[%s175 + $0x380] sm:$0xff] %v814
        %1327 = vst [vmem:[%s175 + $0x388] sm:$0xff] %v815
        %1328 = vst [vmem:[%s175 + $0x390] sm:$0xff] %v816
        %1329 = vst [vmem:[%s175 + $0x398] sm:$0xff] %v817
        %1330 = vst [vmem:[%s175 + $0x3a0] sm:$0xff] %v818
        %1331 = vst [vmem:[%s175 + $0x3a8] sm:$0xff] %v819
        %1332 = vst [vmem:[%s175 + $0x3b0] sm:$0xff] %v820
        %1333 = vst [vmem:[%s175 + $0x3b8] sm:$0xff] %v821
        %1334 = vst [vmem:[%s175 + $0x3c0] sm:$0xff] %v822
        %1335 = vst [vmem:[%s175 + $0x3c8] sm:$0xff] %v823
        %1336 = vst [vmem:[%s175 + $0x3d0] sm:$0xff] %v824
        %1337 = vst [vmem:[%s175 + $0x3d8] sm:$0xff] %v825
        %1338 = vst [vmem:[%s175 + $0x3e0] sm:$0xff] %v826
        %1339 = vst [vmem:[%s175 + $0x3e8] sm:$0xff] %v827
        %1340 = vst [vmem:[%s175 + $0x3f0] sm:$0xff] %v828
        %1341 = vst [vmem:[%s175 + $0x3f8] sm:$0xff] %v829
        %1342 = vst [vmem:[%s175 + $0x400] sm:$0xff] %v830
        %1343 = vst [vmem:[%s175 + $0x408] sm:$0xff] %v831
        %1344 = vst [vmem:[%s175 + $0x410] sm:$0xff] %v832
        %1345 = vst [vmem:[%s175 + $0x418] sm:$0xff] %v833
        %1346 = vst [vmem:[%s175 + $0x420] sm:$0xff] %v834
        %1347 = vst [vmem:[%s175 + $0x428] sm:$0xff] %v835
        %1348 = vst [vmem:[%s175 + $0x430] sm:$0xff] %v836
        %1349 = vst [vmem:[%s175 + $0x438] sm:$0xff] %v837
        %1350 = vst [vmem:[%s175 + $0x440] sm:$0xff] %v838
        %1351 = vst [vmem:[%s175 + $0x448] sm:$0xff] %v839
        %1352 = vst [vmem:[%s175 + $0x450] sm:$0xff] %v840
        %1353 = vst [vmem:[%s175 + $0x458] sm:$0xff] %v841
        %1354 = vst [vmem:[%s175 + $0x460] sm:$0xff] %v842
        %1355 = vst [vmem:[%s175 + $0x468] sm:$0xff] %v843
        %1356 = vst [vmem:[%s175 + $0x470] sm:$0xff] %v844
        %1357 = vst [vmem:[%s175 + $0x478] sm:$0xff] %v845
        %1358 = vst [vmem:[%s175 + $0x480] sm:$0xff] %v846
        %1359 = vst [vmem:[%s175 + $0x488] sm:$0xff] %v847
        %1360 = vst [vmem:[%s175 + $0x490] sm:$0xff] %v848
        %1361 = vst [vmem:[%s175 + $0x498] sm:$0xff] %v849
        %1362 = vst [vmem:[%s175 + $0x4a0] sm:$0xff] %v850
        %1363 = vst [vmem:[%s175 + $0x4a8] sm:$0xff] %v851
        %1364 = vst [vmem:[%s175 + $0x4b0] sm:$0xff] %v852
        %1365 = vst [vmem:[%s175 + $0x4b8] sm:$0xff] %v853
        %1366 = vst [vmem:[%s175 + $0x4c0] sm:$0xff] %v854
        %1367 = vst [vmem:[%s175 + $0x4c8] sm:$0xff] %v855
        %1368 = vst [vmem:[%s175 + $0x4d0] sm:$0xff] %v856
        %1369 = vst [vmem:[%s175 + $0x4d8] sm:$0xff] %v857
        %1370 = vst [vmem:[%s175 + $0x4e0] sm:$0xff] %v858
        %1371 = vst [vmem:[%s175 + $0x4e8] sm:$0xff] %v859
        %1372 = vst [vmem:[%s175 + $0x4f0] sm:$0xff] %v860
        %1373 = vst [vmem:[%s175 + $0x4f8] sm:$0xff] %v861
        %1374 = vst [vmem:[%s175 + $0x500] sm:$0xff] %v862
        %1375 = vst [vmem:[%s175 + $0x508] sm:$0xff] %v863
        %1376 = vst [vmem:[%s175 + $0x510] sm:$0xff] %v864
        %1377 = vst [vmem:[%s175 + $0x518] sm:$0xff] %v865
        %1378 = vst [vmem:[%s175 + $0x520] sm:$0xff] %v866
        %1379 = vst [vmem:[%s175 + $0x528] sm:$0xff] %v867
        %1380 = vst [vmem:[%s175 + $0x530] sm:$0xff] %v868
        %1381 = vst [vmem:[%s175 + $0x538] sm:$0xff] %v869
        %1382 = vst [vmem:[%s175 + $0x540] sm:$0xff] %v870
        %1383 = vst [vmem:[%s175 + $0x548] sm:$0xff] %v871
        %1384 = vst [vmem:[%s175 + $0x550] sm:$0xff] %v872
        %1385 = vst [vmem:[%s175 + $0x558] sm:$0xff] %v873
        %1386 = vst [vmem:[%s175 + $0x560] sm:$0xff] %v874
        %1387 = vst [vmem:[%s175 + $0x568] sm:$0xff] %v875
        %1388 = vst [vmem:[%s175 + $0x570] sm:$0xff] %v876
        %1389 = vst [vmem:[%s175 + $0x578] sm:$0xff] %v877
        %1390 = vst [vmem:[%s175 + $0x580] sm:$0xff] %v878
        %1391 = vst [vmem:[%s175 + $0x588] sm:$0xff] %v879
        %1392 = vst [vmem:[%s175 + $0x590] sm:$0xff] %v880
        %1393 = vst [vmem:[%s175 + $0x598] sm:$0xff] %v881
        %1394 = vst [vmem:[%s175 + $0x5a0] sm:$0xff] %v882
        %1395 = vst [vmem:[%s175 + $0x5a8] sm:$0xff] %v883
        %1396 = vst [vmem:[%s175 + $0x5b0] sm:$0xff] %v884
        %1397 = vst [vmem:[%s175 + $0x5b8] sm:$0xff] %v885
        %1398 = vst [vmem:[%s175 + $0x5c0] sm:$0xff] %v886
        %1399 = vst [vmem:[%s175 + $0x5c8] sm:$0xff] %v887
        %1400 = vst [vmem:[%s175 + $0x5d0] sm:$0xff] %v888
        %1401 = vst [vmem:[%s175 + $0x5d8] sm:$0xff] %v889
        %1402 = vst [vmem:[%s175 + $0x5e0] sm:$0xff] %v890
        %1403 = vst [vmem:[%s175 + $0x5e8] sm:$0xff] %v891
        %1404 = vst [vmem:[%s175 + $0x5f0] sm:$0xff] %v892
        %1405 = vst [vmem:[%s175 + $0x5f8] sm:$0xff] %v893
        %1406 = vst [vmem:[%s175 + $0x600] sm:$0xff] %v894
        %1407 = vst [vmem:[%s175 + $0x608] sm:$0xff] %v895
        %1408 = vst [vmem:[%s175 + $0x610] sm:$0xff] %v896
        %1409 = vst [vmem:[%s175 + $0x618] sm:$0xff] %v897
        %1410 = vst [vmem:[%s175 + $0x620] sm:$0xff] %v898
        %1411 = vst [vmem:[%s175 + $0x628] sm:$0xff] %v899
        %1412 = vst [vmem:[%s175 + $0x630] sm:$0xff] %v900
        %1413 = vst [vmem:[%s175 + $0x638] sm:$0xff] %v901
        %1414 = vst [vmem:[%s175 + $0x640] sm:$0xff] %v902
        %1415 = vst [vmem:[%s175 + $0x648] sm:$0xff] %v903
        %1416 = vst [vmem:[%s175 + $0x650] sm:$0xff] %v904
        %1417 = vst [vmem:[%s175 + $0x658] sm:$0xff] %v905
        %1418 = vst [vmem:[%s175 + $0x660] sm:$0xff] %v906
        %1419 = vst [vmem:[%s175 + $0x668] sm:$0xff] %v907
        %1420 = vst [vmem:[%s175 + $0x670] sm:$0xff] %v908
        %1421 = vst [vmem:[%s175 + $0x678] sm:$0xff] %v909
        %1422 = vst [vmem:[%s175 + $0x680] sm:$0xff] %v910
        %1423 = vst [vmem:[%s175 + $0x688] sm:$0xff] %v911
        %1424 = vst [vmem:[%s175 + $0x690] sm:$0xff] %v912
        %1425 = vst [vmem:[%s175 + $0x698] sm:$0xff] %v913
        %1426 = vst [vmem:[%s175 + $0x6a0] sm:$0xff] %v914
        %1427 = vst [vmem:[%s175 + $0x6a8] sm:$0xff] %v915
        %1428 = vst [vmem:[%s175 + $0x6b0] sm:$0xff] %v916
        %1429 = vst [vmem:[%s175 + $0x6b8] sm:$0xff] %v917
        %1430 = vst [vmem:[%s175 + $0x6c0] sm:$0xff] %v918
        %1431 = vst [vmem:[%s175 + $0x6c8] sm:$0xff] %v919
        %1432 = vst [vmem:[%s175 + $0x6d0] sm:$0xff] %v920
        %1433 = vst [vmem:[%s175 + $0x6d8] sm:$0xff] %v921
        %1434 = vst [vmem:[%s175 + $0x6e0] sm:$0xff] %v922
        %1435 = vst [vmem:[%s175 + $0x6e8] sm:$0xff] %v923
        %1436 = vst [vmem:[%s175 + $0x6f0] sm:$0xff] %v924
        %1437 = vst [vmem:[%s175 + $0x6f8] sm:$0xff] %v925
        %1438 = vst [vmem:[%s175 + $0x700] sm:$0xff] %v926
        %1439 = vst [vmem:[%s175 + $0x708] sm:$0xff] %v927
        %1440 = vst [vmem:[%s175 + $0x710] sm:$0xff] %v928
        %1441 = vst [vmem:[%s175 + $0x718] sm:$0xff] %v929
        %1442 = vst [vmem:[%s175 + $0x720] sm:$0xff] %v930
        %1443 = vst [vmem:[%s175 + $0x728] sm:$0xff] %v931
        %1444 = vst [vmem:[%s175 + $0x730] sm:$0xff] %v932
        %1445 = vst [vmem:[%s175 + $0x738] sm:$0xff] %v933
        %1446 = vst [vmem:[%s175 + $0x740] sm:$0xff] %v934
        %1447 = vst [vmem:[%s175 + $0x748] sm:$0xff] %v935
        %1448 = vst [vmem:[%s175 + $0x750] sm:$0xff] %v936
        %1449 = vst [vmem:[%s175 + $0x758] sm:$0xff] %v937
        %1450 = vst [vmem:[%s175 + $0x760] sm:$0xff] %v938
        %1451 = vst [vmem:[%s175 + $0x768] sm:$0xff] %v939
        %1452 = vst [vmem:[%s175 + $0x770] sm:$0xff] %v940
        %1453 = vst [vmem:[%s175 + $0x778] sm:$0xff] %v941
        %1454 = vst [vmem:[%s175 + $0x780] sm:$0xff] %v942
        %1455 = vst [vmem:[%s175 + $0x788] sm:$0xff] %v943
        %1456 = vst [vmem:[%s175 + $0x790] sm:$0xff] %v944
        %1457 = vst [vmem:[%s175 + $0x798] sm:$0xff] %v945
        %1458 = vst [vmem:[%s175 + $0x7a0] sm:$0xff] %v946
        %1459 = vst [vmem:[%s175 + $0x7a8] sm:$0xff] %v947
        %1460 = vst [vmem:[%s175 + $0x7b0] sm:$0xff] %v948
        %1461 = vst [vmem:[%s175 + $0x7b8] sm:$0xff] %v949
        %1462 = vst [vmem:[%s175 + $0x7c0] sm:$0xff] %v950
        %1463 = vst [vmem:[%s175 + $0x7c8] sm:$0xff] %v951
        %1464 = vst [vmem:[%s175 + $0x7d0] sm:$0xff] %v952
        %1465 = vst [vmem:[%s175 + $0x7d8] sm:$0xff] %v953
        %1466 = vst [vmem:[%s175 + $0x7e0] sm:$0xff] %v954
        %1467 = vst [vmem:[%s175 + $0x7e8] sm:$0xff] %v955
        %1468 = vst [vmem:[%s175 + $0x7f0] sm:$0xff] %v956
        %1469 = vst [vmem:[%s175 + $0x7f8] sm:$0xff] %v957
        %1470 = vst [vmem:[%s175 + $0x800] sm:$0xff] %v958
        %1471 = vst [vmem:[%s175 + $0x808] sm:$0xff] %v959
        %1472 = vst [vmem:[%s175 + $0x810] sm:$0xff] %v960
        %1473 = vst [vmem:[%s175 + $0x818] sm:$0xff] %v961
        %1474 = vst [vmem:[%s175 + $0x820] sm:$0xff] %v962
        %1475 = vst [vmem:[%s175 + $0x828] sm:$0xff] %v963
        %1476 = vst [vmem:[%s175 + $0x830] sm:$0xff] %v964
        %1477 = vst [vmem:[%s175 + $0x838] sm:$0xff] %v965
        %1478 = vst [vmem:[%s175 + $0x840] sm:$0xff] %v966
        %1479 = vst [vmem:[%s175 + $0x848] sm:$0xff] %v967
        %1480 = vst [vmem:[%s175 + $0x850] sm:$0xff] %v968
        %1481 = vst [vmem:[%s175 + $0x858] sm:$0xff] %v969
        %1482 = vst [vmem:[%s175 + $0x860] sm:$0xff] %v970
        %1483 = vst [vmem:[%s175 + $0x868] sm:$0xff] %v971
        %1484 = vst [vmem:[%s175 + $0x870] sm:$0xff] %v972
        %1485 = vst [vmem:[%s175 + $0x878] sm:$0xff] %v973
        %1486 = vst [vmem:[%s175 + $0x880] sm:$0xff] %v974
        %1487 = vst [vmem:[%s175 + $0x888] sm:$0xff] %v975
        %1488 = vst [vmem:[%s175 + $0x890] sm:$0xff] %v976
        %1489 = vst [vmem:[%s175 + $0x898] sm:$0xff] %v977
        %1490 = vst [vmem:[%s175 + $0x8a0] sm:$0xff] %v978
        %1491 = vst [vmem:[%s175 + $0x8a8] sm:$0xff] %v979
        %1492 = vst [vmem:[%s175 + $0x8b0] sm:$0xff] %v980
        %1493 = vst [vmem:[%s175 + $0x8b8] sm:$0xff] %v981
        %1494 = vst [vmem:[%s175 + $0x8c0] sm:$0xff] %v982
        %1495 = vst [vmem:[%s175 + $0x8c8] sm:$0xff] %v983
        %1496 = vst [vmem:[%s175 + $0x8d0] sm:$0xff] %v984
        %1497 = vst [vmem:[%s175 + $0x8d8] sm:$0xff] %v985
        %1498 = vst [vmem:[%s175 + $0x8e0] sm:$0xff] %v986
        %1499 = vst [vmem:[%s175 + $0x8e8] sm:$0xff] %v987
        %1500 = vst [vmem:[%s175 + $0x8f0] sm:$0xff] %v988
        %1501 = vst [vmem:[%s175 + $0x8f8] sm:$0xff] %v989
        %1502 = vst [vmem:[%s175 + $0x900] sm:$0xff] %v990
        %1503 = vst [vmem:[%s175 + $0x908] sm:$0xff] %v991
        %1504 = vst [vmem:[%s175 + $0x910] sm:$0xff] %v992
        %1505 = vst [vmem:[%s175 + $0x918] sm:$0xff] %v993
        %1506 = vst [vmem:[%s175 + $0x920] sm:$0xff] %v994
        %1507 = vst [vmem:[%s175 + $0x928] sm:$0xff] %v995
        %1508 = vst [vmem:[%s175 + $0x930] sm:$0xff] %v996
        %1509 = vst [vmem:[%s175 + $0x938] sm:$0xff] %v997
        %1510 = vst [vmem:[%s175 + $0x940] sm:$0xff] %v998
        %1511 = vst [vmem:[%s175 + $0x948] sm:$0xff] %v999
        %1512 = vst [vmem:[%s175 + $0x950] sm:$0xff] %v1000
        %1513 = vst [vmem:[%s175 + $0x958] sm:$0xff] %v1001
        %1514 = vst [vmem:[%s175 + $0x960] sm:$0xff] %v1002
        %1515 = vst [vmem:[%s175 + $0x968] sm:$0xff] %v1003
        %1516 = vst [vmem:[%s175 + $0x970] sm:$0xff] %v1004
        %1517 = vst [vmem:[%s175 + $0x978] sm:$0xff] %v1005
        %1518 = vst [vmem:[%s175 + $0x980] sm:$0xff] %v1006
        %1519 = vst [vmem:[%s175 + $0x988] sm:$0xff] %v1007
        %1520 = vst [vmem:[%s175 + $0x990] sm:$0xff] %v1008
        %1521 = vst [vmem:[%s175 + $0x998] sm:$0xff] %v1009
        %1522 = vst [vmem:[%s175 + $0x9a0] sm:$0xff] %v1010
        %1523 = vst [vmem:[%s175 + $0x9a8] sm:$0xff] %v1011
        %1524 = vst [vmem:[%s175 + $0x9b0] sm:$0xff] %v1012
        %1525 = vst [vmem:[%s175 + $0x9b8] sm:$0xff] %v1013
        %1526 = vst [vmem:[%s175 + $0x9c0] sm:$0xff] %v1014
        %1527 = vst [vmem:[%s175 + $0x9c8] sm:$0xff] %v1015
        %1528 = vst [vmem:[%s175 + $0x9d0] sm:$0xff] %v1016
        %1529 = vst [vmem:[%s175 + $0x9d8] sm:$0xff] %v1017
        %1530 = vst [vmem:[%s175 + $0x9e0] sm:$0xff] %v1018
        %1531 = vst [vmem:[%s175 + $0x9e8] sm:$0xff] %v1019
        %1532 = vst [vmem:[%s175 + $0x9f0] sm:$0xff] %v1020
        %1533 = vst [vmem:[%s175 + $0x9f8] sm:$0xff] %v1021
        %1534 = vst [vmem:[%s175 + $0xa00] sm:$0xff] %v1022
        %1535 = vst [vmem:[%s175 + $0xa08] sm:$0xff] %v1023
        %1536 = vst [vmem:[%s175 + $0xa10] sm:$0xff] %v1024
        %1537 = vst [vmem:[%s175 + $0xa18] sm:$0xff] %v1025
        %1538 = vst [vmem:[%s175 + $0xa20] sm:$0xff] %v1026
        %1539 = vst [vmem:[%s175 + $0xa28] sm:$0xff] %v1027
        %1540 = vst [vmem:[%s175 + $0xa30] sm:$0xff] %v1028
        %1541 = vst [vmem:[%s175 + $0xa38] sm:$0xff] %v1029
        %1542 = vst [vmem:[%s175 + $0xa40] sm:$0xff] %v1030
        %1543 = vst [vmem:[%s175 + $0xa48] sm:$0xff] %v1031
        %1544 = vst [vmem:[%s175 + $0xa50] sm:$0xff] %v1032
        %1545 = vst [vmem:[%s175 + $0xa58] sm:$0xff] %v1033
        %1546 = vst [vmem:[%s175 + $0xa60] sm:$0xff] %v1034
        %1547 = vst [vmem:[%s175 + $0xa68] sm:$0xff] %v1035
        %1548 = vst [vmem:[%s175 + $0xa70] sm:$0xff] %v1036
        %1549 = vst [vmem:[%s175 + $0xa78] sm:$0xff] %v1037
        %1550 = vst [vmem:[%s175 + $0xa80] sm:$0xff] %v1038
        %1551 = vst [vmem:[%s175 + $0xa88] sm:$0xff] %v1039
        %1552 = vst [vmem:[%s175 + $0xa90] sm:$0xff] %v1040
        %1553 = vst [vmem:[%s175 + $0xa98] sm:$0xff] %v1041
        %1554 = vst [vmem:[%s175 + $0xaa0] sm:$0xff] %v1042
        %1555 = vst [vmem:[%s175 + $0xaa8] sm:$0xff] %v1043
        %1556 = vst [vmem:[%s175 + $0xab0] sm:$0xff] %v1044
        %1557 = vst [vmem:[%s175 + $0xab8] sm:$0xff] %v1045
        %1558 = vst [vmem:[%s175 + $0xac0] sm:$0xff] %v1046
        %1559 = vst [vmem:[%s175 + $0xac8] sm:$0xff] %v1047
        %1560 = vst [vmem:[%s175 + $0xad0] sm:$0xff] %v1048
        %1561 = vst [vmem:[%s175 + $0xad8] sm:$0xff] %v1049
        %1562 = vst [vmem:[%s175 + $0xae0] sm:$0xff] %v1050
        %1563 = vst [vmem:[%s175 + $0xae8] sm:$0xff] %v1051
        %1564 = vst [vmem:[%s175 + $0xaf0] sm:$0xff] %v1052
        %1565 = vst [vmem:[%s175 + $0xaf8] sm:$0xff] %v1053
        %1566 = vst [vmem:[%s175 + $0xb00] sm:$0xff] %v1054
        %1567 = vst [vmem:[%s175 + $0xb08] sm:$0xff] %v1055
        %1568 = vst [vmem:[%s175 + $0xb10] sm:$0xff] %v1056
        %1569 = vst [vmem:[%s175 + $0xb18] sm:$0xff] %v1057
        %1570 = vst [vmem:[%s175 + $0xb20] sm:$0xff] %v1058
        %1571 = vst [vmem:[%s175 + $0xb28] sm:$0xff] %v1059
        %1572 = vst [vmem:[%s175 + $0xb30] sm:$0xff] %v1060
        %1573 = vst [vmem:[%s175 + $0xb38] sm:$0xff] %v1061
        %1574 = vst [vmem:[%s175 + $0xb40] sm:$0xff] %v1062
        %1575 = vst [vmem:[%s175 + $0xb48] sm:$0xff] %v1063
        %1576 = vst [vmem:[%s175 + $0xb50] sm:$0xff] %v1064
        %1577 = vst [vmem:[%s175 + $0xb58] sm:$0xff] %v1065
        %1578 = vst [vmem:[%s175 + $0xb60] sm:$0xff] %v1066
        %1579 = vst [vmem:[%s175 + $0xb68] sm:$0xff] %v1067
        %1580 = vst [vmem:[%s175 + $0xb70] sm:$0xff] %v1068
        %1581 = vst [vmem:[%s175 + $0xb78] sm:$0xff] %v1069
        %1582 = vst [vmem:[%s175 + $0xb80] sm:$0xff] %v1070
        %1583 = vst [vmem:[%s175 + $0xb88] sm:$0xff] %v1071
        %1584 = vst [vmem:[%s175 + $0xb90] sm:$0xff] %v1072
        %1585 = vst [vmem:[%s175 + $0xb98] sm:$0xff] %v1073
        %1586 = vst [vmem:[%s175 + $0xba0] sm:$0xff] %v1074
        %1587 = vst [vmem:[%s175 + $0xba8] sm:$0xff] %v1075
        %1588 = vst [vmem:[%s175 + $0xbb0] sm:$0xff] %v1076
        %1589 = vst [vmem:[%s175 + $0xbb8] sm:$0xff] %v1077
        %1590 = vst [vmem:[%s175 + $0xbc0] sm:$0xff] %v1078
        %1591 = vst [vmem:[%s175 + $0xbc8] sm:$0xff] %v1079
        %1592 = vst [vmem:[%s175 + $0xbd0] sm:$0xff] %v1080
        %1593 = vst [vmem:[%s175 + $0xbd8] sm:$0xff] %v1081
        %1594 = vst [vmem:[%s175 + $0xbe0] sm:$0xff] %v1082
        %1595 = vst [vmem:[%s175 + $0xbe8] sm:$0xff] %v1083
        %1596 = vst [vmem:[%s175 + $0xbf0] sm:$0xff] %v1084
        %1597 = vst [vmem:[%s175 + $0xbf8] sm:$0xff] %v1085
        %1598 = vst [vmem:[%s175 + $0xc00] sm:$0xff] %v1086
        %1599 = vst [vmem:[%s175 + $0xc08] sm:$0xff] %v1087
        %1600 = vst [vmem:[%s175 + $0xc10] sm:$0xff] %v1088
        %1601 = vst [vmem:[%s175 + $0xc18] sm:$0xff] %v1089
        %1602 = vst [vmem:[%s175 + $0xc20] sm:$0xff] %v1090
        %1603 = vst [vmem:[%s175 + $0xc28] sm:$0xff] %v1091
        %1604 = vst [vmem:[%s175 + $0xc30] sm:$0xff] %v1092
        %1605 = vst [vmem:[%s175 + $0xc38] sm:$0xff] %v1093
        %1606 = vst [vmem:[%s175 + $0xc40] sm:$0xff] %v1094
        %1607 = vst [vmem:[%s175 + $0xc48] sm:$0xff] %v1095
        %1608 = vst [vmem:[%s175 + $0xc50] sm:$0xff] %v1096
        %1609 = vst [vmem:[%s175 + $0xc58] sm:$0xff] %v1097
        %1610 = vst [vmem:[%s175 + $0xc60] sm:$0xff] %v1098
        %1611 = vst [vmem:[%s175 + $0xc68] sm:$0xff] %v1099
        %1612 = vst [vmem:[%s175 + $0xc70] sm:$0xff] %v1100
        %1613 = vst [vmem:[%s175 + $0xc78] sm:$0xff] %v1101
        %1614 = vst [vmem:[%s175 + $0xc80] sm:$0xff] %v1102
        %1615 = vst [vmem:[%s175 + $0xc88] sm:$0xff] %v1103
        %1616 = vst [vmem:[%s175 + $0xc90] sm:$0xff] %v1104
        %1617 = vst [vmem:[%s175 + $0xc98] sm:$0xff] %v1105
        %1618 = vst [vmem:[%s175 + $0xca0] sm:$0xff] %v1106
        %1619 = vst [vmem:[%s175 + $0xca8] sm:$0xff] %v1107
        %1620 = vst [vmem:[%s175 + $0xcb0] sm:$0xff] %v1108
        %1621 = vst [vmem:[%s175 + $0xcb8] sm:$0xff] %v1109
        %1622 = vst [vmem:[%s175 + $0xcc0] sm:$0xff] %v1110
        %1623 = vst [vmem:[%s175 + $0xcc8] sm:$0xff] %v1111
        %1624 = vst [vmem:[%s175 + $0xcd0] sm:$0xff] %v1112
        %1625 = vst [vmem:[%s175 + $0xcd8] sm:$0xff] %v1113
        %1626 = vst [vmem:[%s175 + $0xce0] sm:$0xff] %v1114
        %1627 = vst [vmem:[%s175 + $0xce8] sm:$0xff] %v1115
        %1628 = vst [vmem:[%s175 + $0xcf0] sm:$0xff] %v1116
        %1629 = vst [vmem:[%s175 + $0xcf8] sm:$0xff] %v1117
        %1630 = vst [vmem:[%s175 + $0xd00] sm:$0xff] %v1118
        %1631 = vst [vmem:[%s175 + $0xd08] sm:$0xff] %v1119
        %1632 = vst [vmem:[%s175 + $0xd10] sm:$0xff] %v1120
        %1633 = vst [vmem:[%s175 + $0xd18] sm:$0xff] %v1121
        %1634 = vst [vmem:[%s175 + $0xd20] sm:$0xff] %v1122
        %1635 = vst [vmem:[%s175 + $0xd28] sm:$0xff] %v1123
        %1636 = vst [vmem:[%s175 + $0xd30] sm:$0xff] %v1124
        %1637 = vst [vmem:[%s175 + $0xd38] sm:$0xff] %v1125
        %1638 = vst [vmem:[%s175 + $0xd40] sm:$0xff] %v1126
        %1639 = vst [vmem:[%s175 + $0xd48] sm:$0xff] %v1127
        %1640 = vst [vmem:[%s175 + $0xd50] sm:$0xff] %v1128
        %1641 = vst [vmem:[%s175 + $0xd58] sm:$0xff] %v1129
        %1642 = vst [vmem:[%s175 + $0xd60] sm:$0xff] %v1130
        %1643 = vst [vmem:[%s175 + $0xd68] sm:$0xff] %v1131
        %1644 = vst [vmem:[%s175 + $0xd70] sm:$0xff] %v1132
        %1645 = vst [vmem:[%s175 + $0xd78] sm:$0xff] %v1133
        %1646 = vst [vmem:[%s175 + $0xd80] sm:$0xff] %v1134
        %1647 = vst [vmem:[%s175 + $0xd88] sm:$0xff] %v1135
        %1648 = vst [vmem:[%s175 + $0xd90] sm:$0xff] %v1136
        %1649 = vst [vmem:[%s175 + $0xd98] sm:$0xff] %v1137
        %1650 = vst [vmem:[%s175 + $0xda0] sm:$0xff] %v1138
        %1651 = vst [vmem:[%s175 + $0xda8] sm:$0xff] %v1139
        %1652 = vst [vmem:[%s175 + $0xdb0] sm:$0xff] %v1140
        %1653 = vst [vmem:[%s175 + $0xdb8] sm:$0xff] %v1141
        %1654 = vst [vmem:[%s175 + $0xdc0] sm:$0xff] %v1142
        %1655 = vst [vmem:[%s175 + $0xdc8] sm:$0xff] %v1143
        %1656 = vst [vmem:[%s175 + $0xdd0] sm:$0xff] %v1144
        %1657 = vst [vmem:[%s175 + $0xdd8] sm:$0xff] %v1145
        %1658 = vst [vmem:[%s175 + $0xde0] sm:$0xff] %v1146
        %1659 = vst [vmem:[%s175 + $0xde8] sm:$0xff] %v1147
        %1660 = vst [vmem:[%s175 + $0xdf0] sm:$0xff] %v1148
        %1661 = vst [vmem:[%s175 + $0xdf8] sm:$0xff] %v1149
        %1662 = vst [vmem:[%s175 + $0xe00] sm:$0xff] %v1150
        %1663 = vst [vmem:[%s175 + $0xe08] sm:$0xff] %v1151
        %1664 = vst [vmem:[%s175 + $0xe10] sm:$0xff] %v1152
        %1665 = vst [vmem:[%s175 + $0xe18] sm:$0xff] %v1153
        %1666 = vst [vmem:[%s175 + $0xe20] sm:$0xff] %v1154
        %1667 = vst [vmem:[%s175 + $0xe28] sm:$0xff] %v1155
        %1668 = vst [vmem:[%s175 + $0xe30] sm:$0xff] %v1156
        %1669 = vst [vmem:[%s175 + $0xe38] sm:$0xff] %v1157
        %1670 = vst [vmem:[%s175 + $0xe40] sm:$0xff] %v1158
        %1671 = vst [vmem:[%s175 + $0xe48] sm:$0xff] %v1159
        %1672 = vst [vmem:[%s175 + $0xe50] sm:$0xff] %v1160
        %1673 = vst [vmem:[%s175 + $0xe58] sm:$0xff] %v1161
        %1674 = vst [vmem:[%s175 + $0xe60] sm:$0xff] %v1162
        %1675 = vst [vmem:[%s175 + $0xe68] sm:$0xff] %v1163
        %1676 = vst [vmem:[%s175 + $0xe70] sm:$0xff] %v1164
        %1677 = vst [vmem:[%s175 + $0xe78] sm:$0xff] %v1165
        %1678 = vst [vmem:[%s175 + $0xe80] sm:$0xff] %v1166
        %1679 = vst [vmem:[%s175 + $0xe88] sm:$0xff] %v1167
        %1680 = vst [vmem:[%s175 + $0xe90] sm:$0xff] %v1168
        %1681 = vst [vmem:[%s175 + $0xe98] sm:$0xff] %v1169
        %1682 = vst [vmem:[%s175 + $0xea0] sm:$0xff] %v1170
        %1683 = vst [vmem:[%s175 + $0xea8] sm:$0xff] %v1171
        %1684 = vst [vmem:[%s175 + $0xeb0] sm:$0xff] %v1172
        %1685 = vst [vmem:[%s175 + $0xeb8] sm:$0xff] %v1173
        %1686 = vst [vmem:[%s175 + $0xec0] sm:$0xff] %v1174
        %1687 = vst [vmem:[%s175 + $0xec8] sm:$0xff] %v1175
        %1688 = vst [vmem:[%s175 + $0xed0] sm:$0xff] %v1176
        %1689 = vst [vmem:[%s175 + $0xed8] sm:$0xff] %v1177
        %1690 = vst [vmem:[%s175 + $0xee0] sm:$0xff] %v1178
        %1691 = vst [vmem:[%s175 + $0xee8] sm:$0xff] %v1179
        %1692 = vst [vmem:[%s175 + $0xef0] sm:$0xff] %v1180
        %1693 = vst [vmem:[%s175 + $0xef8] sm:$0xff] %v1181
        %1694 = vst [vmem:[%s175 + $0xf00] sm:$0xff] %v1182
        %1695 = vst [vmem:[%s175 + $0xf08] sm:$0xff] %v1183
        %1696 = vst [vmem:[%s175 + $0xf10] sm:$0xff] %v1184
        %1697 = vst [vmem:[%s175 + $0xf18] sm:$0xff] %v1185
        %1698 = vst [vmem:[%s175 + $0xf20] sm:$0xff] %v1186
        %1699 = vst [vmem:[%s175 + $0xf28] sm:$0xff] %v1187
        %1700 = vst [vmem:[%s175 + $0xf30] sm:$0xff] %v1188
        %1701 = vst [vmem:[%s175 + $0xf38] sm:$0xff] %v1189
        %1702 = vst [vmem:[%s175 + $0xf40] sm:$0xff] %v1190
        %1703 = vst [vmem:[%s175 + $0xf48] sm:$0xff] %v1191
        %1704 = vst [vmem:[%s175 + $0xf50] sm:$0xff] %v1192
        %1705 = vst [vmem:[%s175 + $0xf58] sm:$0xff] %v1193
        %1706 = vst [vmem:[%s175 + $0xf60] sm:$0xff] %v1194
        %1707 = vst [vmem:[%s175 + $0xf68] sm:$0xff] %v1195
        %1708 = vst [vmem:[%s175 + $0xf70] sm:$0xff] %v1196
        %1709 = vst [vmem:[%s175 + $0xf78] sm:$0xff] %v1197
        %1710 = vst [vmem:[%s175 + $0xf80] sm:$0xff] %v1198
        %1711 = vst [vmem:[%s175 + $0xf88] sm:$0xff] %v1199
        %1712 = vst [vmem:[%s175 + $0xf90] sm:$0xff] %v1200
        %1713 = vst [vmem:[%s175 + $0xf98] sm:$0xff] %v1201
        %1714 = vst [vmem:[%s175 + $0xfa0] sm:$0xff] %v1202
        %1715 = vst [vmem:[%s175 + $0xfa8] sm:$0xff] %v1203
        %1716 = vst [vmem:[%s175 + $0xfb0] sm:$0xff] %v1204
        %1717 = vst [vmem:[%s175 + $0xfb8] sm:$0xff] %v1205
        %1718 = vst [vmem:[%s175 + $0xfc0] sm:$0xff] %v1206
        %1719 = vst [vmem:[%s175 + $0xfc8] sm:$0xff] %v1207
        %1720 = vst [vmem:[%s175 + $0xfd0] sm:$0xff] %v1208
        %1721 = vst [vmem:[%s175 + $0xfd8] sm:$0xff] %v1209
        %1722 = vst [vmem:[%s175 + $0xfe0] sm:$0xff] %v1210
        %1723 = vst [vmem:[%s175 + $0xfe8] sm:$0xff] %v1211
        %1724 = vst [vmem:[%s175 + $0xff0] sm:$0xff] %v1212
        %1725 = vst [vmem:[%s175 + $0xff8] sm:$0xff] %v1213
        %s1726 = sand.u32 %s75, 1
        %s1727 = scalar_lea.sflag [#allocation4], %s1726
        %s1728 = sand.u32 %s75, 1
        %s1729 = smul.addr %s1728, 4096
        %s1730 = scalar_lea.vmem [#allocation7], %s1729
        // Predicated region
        $region37: #{tpu_custom_call.1} parent=27 // pred_check
          %p1731 = pneg %p85
        $region38: #{tpu_custom_call.1} parent=27 // pred_check_branch
          %1733 = sbr.rel (%p1731) target = $region40
        $region39: #{tpu_custom_call.1} parent=27 // pred_region
          %s1734 = smul.u32 256, %s20
          %s1736 = ssub.s32 65536, 65536
          %1737 = vsyncadd %s1727, %s1736
          %s1738 = smul.addr %s1734, 2
          %s1739 = smul.addr %s1738, 128
          %s1740 = scalar_lea.hbm %s2, %s1739
          %s1741 = sshll.u32 %s1730, 4
          %s1742 = int_to_ptr.vmem [resolvable:$true] %s1741
          %1747 = dma.vmem_to_hbm [thread:$0]  %s1742, 65536, %s1740, %s1727, 256, 256, 16
        $region40: #{tpu_custom_call.1} parent=27 // pred_fallthru
          _
      $region28: #{tpu_custom_call.1} parent=5 // pred_fallthru
        _
      %p1748 = scmp.le.s32.totalorder 2, %s15
      // Predicated region
      $region41: #{tpu_custom_call.1} parent=5 // pred_check
        %p1749 = pneg %p1748
      $region42: #{tpu_custom_call.1} parent=5 // pred_check_branch
        %1751 = sbr.rel (%p1749) target = $region44
      $region43: #{tpu_custom_call.1} parent=5 // pred_region
        %s1752 = ssub.s32 %s15, 2
        // Predicated region
        $region45: #{tpu_custom_call.1} parent=43 // pred_check
          %p1753 = pneg %p91
        $region46: #{tpu_custom_call.1} parent=43 // pred_check_branch
          %1755 = sbr.rel (%p1753) target = $region48
        $region47: #{tpu_custom_call.1} parent=43 // pred_region
          %s1756 = sand.u32 %s76, 1
          %s1757 = scalar_lea.sflag [#allocation4], %s1756
          %s1758 = sand.u32 %s76, 1
          %s1759 = smul.addr %s1758, 4096
          %s1760 = scalar_lea.vmem [#allocation7], %s1759
          %1761 = dma.done %s1757, 65536
        $region48: #{tpu_custom_call.1} parent=43 // pred_fallthru
          _
      $region44: #{tpu_custom_call.1} parent=5 // pred_fallthru
        _
    $region6: #{tpu_custom_call.1} parent=1 // loop_footer
      %s19 = sadd.s32 1, %s15
    $region7: #{tpu_custom_call.1} parent=1 // loop_footer_branch
      %14 = sbr.rel target = $region3
    $region8: #{tpu_custom_call.1} parent=1 // loop_exit
      _
    %1762 = vsyncpa [#allocation3], 1
    %s1763 = scalar_lea.sflag [#allocation3], 1
    %1764 = vsyncpa %s1763, 1
    %1765 = vsyncpa [#allocation6], 1
    %1766 = vsyncpa [#allocation4], 1
    %s1767 = scalar_lea.sflag [#allocation4], 1
    %1768 = vsyncpa %s1767, 1

</llo_original>
